<compile_context>
chip_gen: v7x
topology: tpu7x:2x2x1
jax: 0.10.0
libtpu: 0.0.40
codegen_flags: <defaults>
</compile_context>

<pallas_src>
import functools

import jax
import jax.numpy as jnp
from jax.experimental import pallas as pl
from jax.experimental.pallas import tpu as pltpu

EPS = 1e-5  # BatchNorm eps


def _round_up(x, m):
    return (x + m - 1) // m * m


# ----------------------------------------------------------------------------
# Pallas kernel: fused  out = act(X @ W + bias),  act = SiLU | identity
# (BN scale is folded into W at the call site; accumulate + epilogue in f32.)
# ----------------------------------------------------------------------------
def _fused_mm_kernel(x_ref, w_ref, b_ref, o_ref, *, apply_silu):
    acc = jnp.dot(x_ref[...], w_ref[...], preferred_element_type=jnp.float32)
    y = acc + b_ref[...]
    if apply_silu:
        y = y * jax.nn.sigmoid(y)  # SiLU in f32 on the accumulator
    o_ref[...] = y.astype(o_ref.dtype)


def fused_matmul(x, w, bias, *, apply_silu, out_dtype=jnp.bfloat16, use_pallas=True):
    """y = act(x @ w + bias).  x: (M, K), w: (K, N), bias: (N,).
    Inputs are cast to bf16 for the MXU; accumulation/epilogue stay f32."""
    M, K = x.shape
    _, N = w.shape
    xb = x.astype(jnp.bfloat16)
    wb = w.astype(jnp.bfloat16)
    bf = bias.astype(jnp.float32).reshape(1, N)

    if not use_pallas:  # pure-JAX mirror path (numeric self-check)
        y = jnp.dot(xb, wb, preferred_element_type=jnp.float32) + bf
        if apply_silu:
            y = y * jax.nn.sigmoid(y)
        return y.astype(out_dtype)

    # Big M tiles amortize the ~0.35us per-grid-step cost, but keep >= 4 tiles
    # so v7x's two TensorCores both get work on the "parallel" M axis.
    TM = 512
    while TM > 128 and pl.cdiv(M, TM) < 4:
        TM //= 2
    grid = (pl.cdiv(M, TM),)

    # Rough VMEM estimate (double-buffered x/out tiles + resident weight/bias).
    # Raise the scoped limit only when we actually approach the v5e 16 MiB
    # default; for very large K (= C*9) on v7x the right fix is K/N tiling with
    # an f32 VMEM accumulator (P3) instead of a resident weight.
    # TODO(synk): add 3-D-grid K/N tiling + accumulator for C >= ~768 on v7x;
    # also consider pipeline_mode=pl.Buffered(1) on the constant-index weight.
    out_bytes = jnp.dtype(out_dtype).itemsize
    est = 2 * TM * K * 2 + 2 * K * N * 2 + 2 * TM * N * out_bytes + 2 * N * 4
    cp_kwargs = dict(dimension_semantics=("parallel",))
    if est > 12 * 1024 * 1024:
        cp_kwargs["vmem_limit_bytes"] = min(2 * est, 100 * 1024 * 1024)

    # No padding anywhere: the minor dims of every block equal the full array
    # dims, and the ragged last M block is masked by Pallas on store.
    out = pl.pallas_call(
        functools.partial(_fused_mm_kernel, apply_silu=apply_silu),
        out_shape=jax.ShapeDtypeStruct((M, N), out_dtype),
        grid=grid,
        in_specs=[
            pl.BlockSpec((TM, K), lambda i: (i, 0)),   # streamed activations
            pl.BlockSpec((K, N), lambda i: (0, 0)),    # VMEM-resident weight
            pl.BlockSpec((1, N), lambda i: (0, 0)),    # VMEM-resident bias
        ],
        out_specs=pl.BlockSpec((TM, N), lambda i: (i, 0)),
        compiler_params=pltpu.CompilerParams(**cp_kwargs),
    )(xb, wb, bf)
    return out


# ----------------------------------------------------------------------------
# Plain-JAX glue: BN fold, NHWC im2col, deformable bilinear sampling
# ----------------------------------------------------------------------------
def bn_fold(bn):
    s = bn["gamma"] / jnp.sqrt(bn["var"] + EPS)
    b = bn["beta"] - bn["mean"] * s
    return s, b


def im2col_3x3_nhwc(x, pad=1):
    """x: (N,H,W,C) -> (N*H*W, 9*C), column order (kh, kw, c) -- tap-major.
    TODO(synk): the 9x expansion could be removed by accumulating the 9 shifted
    taps inside the Pallas matmul kernel (halo'd row tiles of x in VMEM)."""
    N, H, W, C = x.shape
    xp = jnp.pad(x, ((0, 0), (pad, pad), (pad, pad), (0, 0)))
    taps = [xp[:, kh:kh + H, kw:kw + W, :] for kh in range(3) for kw in range(3)]
    cols = jnp.stack(taps, axis=3)                       # (N,H,W,9,C)
    return cols.reshape(N * H * W, 9 * C)


def deform_sample(x, offset, mask, k=3, pad=1, dil=1, stride=1):
    """Modulated deformable sampling (torchvision deform_conv2d semantics,
    deformable_groups=1), NHWC.  Returns bf16 columns (N*H*W, 9*C), column
    order (kh, kw, c) -- tap-major, matching the tap-major weight layout.
    offset: (N,H,W,2*K) laid out as [dy_0..dy_{K-1}, dx_0..dx_{K-1}].
    mask:   (N,H,W,K), already sigmoided.
    TODO(synk): offset channel interleaving ([all dy | all dx]) mirrors the
    previous implementation; verify against a torchvision reference if exact
    channel ordering matters for pretrained weights.
    TODO(synk): the 4 data-dependent gathers stay in XLA; fusing sampling with
    the deformable matmul inside Pallas (VMEM-resident x + in-kernel gather)
    is the remaining large win."""
    N, H, W, C = x.shape
    K = k * k
    kh = jnp.repeat(jnp.arange(k), k)                    # (K,)
    kw = jnp.tile(jnp.arange(k), k)                      # (K,)
    oy = jnp.arange(H) * stride - pad
    ox = jnp.arange(W) * stride - pad
    py0 = (oy[:, None, None] + kh[None, None, :] * dil).astype(jnp.float32)  # (H,1,K)
    px0 = (ox[None, :, None] + kw[None, None, :] * dil).astype(jnp.float32)  # (1,W,K)

    dy = offset[..., :K].astype(jnp.float32)             # (N,H,W,K)
    dx = offset[..., K:2 * K].astype(jnp.float32)
    py = py0[None] + dy
    px = px0[None] + dx

    y0 = jnp.floor(py)
    x0 = jnp.floor(px)
    wy1 = py - y0
    wy0 = 1.0 - wy1
    wx1 = px - x0
    wx0 = 1.0 - wx1

    mf = mask.astype(jnp.float32)
    n_idx = jnp.arange(N)[:, None, None, None]
    xb = x.astype(jnp.bfloat16)

    def corner(yc, xc, wgt):
        # Fold mask * bilinear weight * in-bounds validity into one small
        # (N,H,W,K) weight BEFORE the gather -- no full-column post-multiply.
        valid = (yc >= 0) & (yc <= H - 1) & (xc >= 0) & (xc <= W - 1)
        wv = (wgt * mf * valid.astype(jnp.float32)).astype(jnp.bfloat16)
        yi = jnp.clip(yc, 0, H - 1).astype(jnp.int32)
        xi = jnp.clip(xc, 0, W - 1).astype(jnp.int32)
        return xb[n_idx, yi, xi] * wv[..., None]          # (N,H,W,K,C) bf16

    sampled = (corner(y0, x0, wy0 * wx0) + corner(y0, x0 + 1.0, wy0 * wx1) +
               corner(y0 + 1.0, x0, wy1 * wx0) + corner(y0 + 1.0, x0 + 1.0, wy1 * wx1))
    return sampled.reshape(N * H * W, K * C)              # (tap, c) order, no transpose


# ----------------------------------------------------------------------------
# Module forward passes (all NHWC internally)
# ----------------------------------------------------------------------------
def conv1x1_bn_silu(x, w, bn, use_pallas, out_dtype=jnp.bfloat16):
    """Conv(c_in, c_out, 1, 1) + BN + SiLU.  x: (N,H,W,C), w: (c_out,c_in,1,1)."""
    N, H, W, C = x.shape
    cout = w.shape[0]
    s, b = bn_fold(bn)
    wm = w.reshape(cout, C).T * s[None, :]                # fold BN scale into weight
    y = fused_matmul(x.reshape(N * H * W, C), wm, b, apply_silu=True,
                     out_dtype=out_dtype, use_pallas=use_pallas)
    return y.reshape(N, H, W, cout)


def dcn_forward(x, p, use_pallas, out_dtype=jnp.bfloat16):
    """DCN: offset/mask conv -> modulated deformable conv + bias -> BN -> SiLU.
    x: (N,H,W,C)."""
    N, H, W, C = x.shape
    cout = p["weight"].shape[0]

    # conv_offset_mask: 3x3, stride 1, pad 1, with bias (no BN / activation).
    cols = im2col_3x3_nhwc(x)                             # (N*H*W, 9*C) bf16
    wom = p["om_weight"].transpose(2, 3, 1, 0).reshape(9 * C, 27)   # tap-major K
    om = fused_matmul(cols, wom, p["om_bias"], apply_silu=False,
                      out_dtype=jnp.float32, use_pallas=use_pallas)
    om = om.reshape(N, H, W, 27)
    o1, o2, m = om[..., :9], om[..., 9:18], om[..., 18:]
    offset = jnp.concatenate([o1, o2], axis=-1)           # (N,H,W,18)
    mask = jax.nn.sigmoid(m)                              # (N,H,W,9)

    # deformable conv as (sampled columns) @ weight, then bias + BN + SiLU fused.
    dcols = deform_sample(x, offset, mask)                # (N*H*W, 9*C) bf16
    s, b = bn_fold(p["bn"])
    wd = p["weight"].transpose(2, 3, 1, 0).reshape(9 * C, cout) * s[None, :]
    bias_total = s * p["bias"] + b                        # fold conv bias through BN
    y = fused_matmul(dcols, wd, bias_total, apply_silu=True,
                     out_dtype=out_dtype, use_pallas=use_pallas)
    return y.reshape(N, H, W, cout)


def dcnv2_forward(x_nchw, params, use_pallas=True):
    """x_nchw: (N,C,H,W) like the PyTorch module; returns (N,c2,H,W)."""
    c = params["cv1_w"].shape[0] // 2
    x = x_nchw.transpose(0, 2, 3, 1)                      # NCHW -> NHWC once
    y1 = conv1x1_bn_silu(x, params["cv1_w"], params["cv1_bn"], use_pallas)
    ys = [y1[..., :c], y1[..., c:]]
    for bp in params["m"]:
        cur = ys[-1]
        cur = dcn_forward(cur, bp["dcn1"], use_pallas)
        cur = dcn_forward(cur, bp["dcn2"], use_pallas)
        # Bottleneck_DCN: shortcut=False in DCNV2 default -> no residual add
        ys.append(cur)
    ycat = jnp.concatenate(ys, axis=-1)
    out = conv1x1_bn_silu(ycat, params["cv2_w"], params["cv2_bn"], use_pallas,
                          out_dtype=jnp.float32)
    return out.transpose(0, 3, 1, 2)                      # NHWC -> NCHW once


# ----------------------------------------------------------------------------
# Deterministic parameter initialization (matches module __init__ shapes)
# ----------------------------------------------------------------------------
def init_params(key, c1, c2, n=1, e=0.5):
    c = int(c2 * e)
    keys = jax.random.split(key, 2 + 2 * n)

    def conv_w(k, cout, cin, ksz):
        bound = 1.0 / (cin * ksz * ksz) ** 0.5            # Conv2d default bound
        return jax.random.uniform(k, (cout, cin, ksz, ksz), jnp.float32, -bound, bound)

    def bn(cn):
        return dict(gamma=jnp.ones((cn,), jnp.float32), beta=jnp.zeros((cn,), jnp.float32),
                    mean=jnp.zeros((cn,), jnp.float32), var=jnp.ones((cn,), jnp.float32))

    def dcn(k, cin, cout):
        std = 1.0 / (cin * 9) ** 0.5                      # DCN.reset_parameters
        return dict(
            weight=jax.random.uniform(k, (cout, cin, 3, 3), jnp.float32, -std, std),
            bias=jnp.zeros((cout,), jnp.float32),
            om_weight=jnp.zeros((27, cin, 3, 3), jnp.float32),  # zeroed in reset_parameters
            om_bias=jnp.zeros((27,), jnp.float32),
            bn=bn(cout),
        )

    return dict(
        cv1_w=conv_w(keys[0], 2 * c, c1, 1), cv1_bn=bn(2 * c),
        cv2_w=conv_w(keys[1], c2, (2 + n) * c, 1), cv2_bn=bn(c2),
        m=[dict(dcn1=dcn(keys[2 + 2 * i], c, c), dcn2=dcn(keys[3 + 2 * i], c, c))
           for i in range(n)],
    )


if __name__ == "__main__":
    key = jax.random.PRNGKey(0)
    kx, kp = jax.random.split(key)

    N, c1, H, W = 2, 8, 16, 16
    c2, n = 8, 1
    x = jax.random.normal(kx, (N, c1, H, W), jnp.float32)
    params = init_params(kp, c1, c2, n=n)

    fwd = jax.jit(functools.partial(dcnv2_forward, use_pallas=True))
    ref = jax.jit(functools.partial(dcnv2_forward, use_pallas=False))

    out = jax.block_until_ready(fwd(x, params))
    expected = jax.block_until_ready(ref(x, params))

    assert out.shape == (N, c2, H, W), out.shape
    assert bool(jnp.all(jnp.isfinite(out))), "non-finite output"
    assert jnp.allclose(out, expected, atol=2e-2, rtol=2e-2), \
        "Pallas output mismatch vs JAX reference"
    print("KERNEL_OK")
</pallas_src>

<mosaic_0001>
module attributes {stable_mosaic.version = 11 : i64} {
  func.func @_fused_mm_kernel(%arg0: i32, %arg1: memref<128x8xbf16, #tpu.memory_space<vmem>>, %arg2: memref<8x8xbf16, #tpu.memory_space<vmem>>, %arg3: memref<1x8xf32, #tpu.memory_space<vmem>>, %arg4: memref<128x8xbf16, #tpu.memory_space<vmem>>) attributes {dimension_semantics = [#tpu.dimension_semantics<parallel>], iteration_bounds = array<i64: 4>, scalar_prefetch = 0 : i64, scratch_operands = 0 : i64, tpu.core_type = #tpu.core_type<tc>, window_params = [{transform_indices = @transform_0, window_bounds = array<i64: 128, 8>}, {pipeline_mode = #tpu.pipeline_mode<synchronous>, transform_indices = @transform_1, window_bounds = array<i64: 8, 8>}, {pipeline_mode = #tpu.pipeline_mode<synchronous>, transform_indices = @transform_2, window_bounds = array<i64: 1, 8>}, {transform_indices = @transform_3, window_bounds = array<i64: 128, 8>}]} {
    %c0 = arith.constant 0 : index
    %c0_0 = arith.constant 0 : index
    %0 = vector.load %arg1[%c0, %c0_0] : memref<128x8xbf16, #tpu.memory_space<vmem>>, vector<128x8xbf16>
    %c0_1 = arith.constant 0 : index
    %c0_2 = arith.constant 0 : index
    %1 = vector.load %arg2[%c0_1, %c0_2] : memref<8x8xbf16, #tpu.memory_space<vmem>>, vector<8x8xbf16>
    %cst = arith.constant dense<0.000000e+00> : vector<128x8xf32>
    %2 = tpu.matmul %0, %1, %cst {dimension_numbers = #tpu.dot_dimension_numbers<[1], [0], [0], [1], [0, 0, 1, 1], [], []>} : vector<128x8xbf16>, vector<8x8xbf16>, vector<128x8xf32> -> vector<128x8xf32>
    %c0_3 = arith.constant 0 : index
    %c0_4 = arith.constant 0 : index
    %3 = vector.load %arg3[%c0_3, %c0_4] : memref<1x8xf32, #tpu.memory_space<vmem>>, vector<1x8xf32>
    %4 = vector.broadcast %3 : vector<1x8xf32> to vector<128x8xf32>
    %5 = arith.addf %2, %4 : vector<128x8xf32>
    %6 = arith.negf %5 : vector<128x8xf32>
    %7 = math.exp %6 : vector<128x8xf32>
    %cst_5 = arith.constant 1.000000e+00 : f32
    %8 = vector.broadcast %cst_5 : f32 to vector<128x8xf32>
    %9 = arith.addf %8, %7 : vector<128x8xf32>
    %10 = arith.divf %8, %9 : vector<128x8xf32>
    %11 = arith.mulf %5, %10 : vector<128x8xf32>
    %12 = arith.truncf %11 : vector<128x8xf32> to vector<128x8xbf16>
    %c0_6 = arith.constant 0 : index
    %c0_7 = arith.constant 0 : index
    %13 = vector.load %arg4[%c0_6, %c0_7] : memref<128x8xbf16, #tpu.memory_space<vmem>>, vector<128x8xbf16>
    tpu.vector_store %arg4[%c0_6, %c0_7], %12 {strides = array<i32>} : memref<128x8xbf16, #tpu.memory_space<vmem>>, vector<128x8xbf16>,
    return
  }
  func.func @transform_0(%arg0: i32) -> (i32, i32) {
    %c0_i32 = arith.constant 0 : i32
    %c0_i32_0 = arith.constant 0 : i32
    return %arg0, %c0_i32 : i32, i32
  }
  func.func @transform_1(%arg0: i32) -> (i32, i32) {
    %c0_i32 = arith.constant 0 : i32
    %c0_i32_0 = arith.constant 0 : i32
    %c0_i32_1 = arith.constant 0 : i32
    return %c0_i32, %c0_i32_0 : i32, i32
  }
  func.func @transform_2(%arg0: i32) -> (i32, i32) {
    %c0_i32 = arith.constant 0 : i32
    %c0_i32_0 = arith.constant 0 : i32
    %c0_i32_1 = arith.constant 0 : i32
    return %c0_i32, %c0_i32_0 : i32, i32
  }
  func.func @transform_3(%arg0: i32) -> (i32, i32) {
    %c0_i32 = arith.constant 0 : i32
    %c0_i32_0 = arith.constant 0 : i32
    return %arg0, %c0_i32 : i32, i32
  }
}

module attributes {stable_mosaic.version = 11 : i64} {
  func.func @_fused_mm_kernel(%arg0: i32, %arg1: memref<128x36xbf16, #tpu.memory_space<vmem>>, %arg2: memref<36x27xbf16, #tpu.memory_space<vmem>>, %arg3: memref<1x27xf32, #tpu.memory_space<vmem>>, %arg4: memref<128x27xf32, #tpu.memory_space<vmem>>) attributes {dimension_semantics = [#tpu.dimension_semantics<parallel>], iteration_bounds = array<i64: 4>, scalar_prefetch = 0 : i64, scratch_operands = 0 : i64, tpu.core_type = #tpu.core_type<tc>, window_params = [{transform_indices = @transform_0, window_bounds = array<i64: 128, 36>}, {pipeline_mode = #tpu.pipeline_mode<synchronous>, transform_indices = @transform_1, window_bounds = array<i64: 36, 27>}, {pipeline_mode = #tpu.pipeline_mode<synchronous>, transform_indices = @transform_2, window_bounds = array<i64: 1, 27>}, {transform_indices = @transform_3, window_bounds = array<i64: 128, 27>}]} {
    %c0 = arith.constant 0 : index
    %c0_0 = arith.constant 0 : index
    %0 = vector.load %arg1[%c0, %c0_0] : memref<128x36xbf16, #tpu.memory_space<vmem>>, vector<128x36xbf16>
    %c0_1 = arith.constant 0 : index
    %c0_2 = arith.constant 0 : index
    %1 = vector.load %arg2[%c0_1, %c0_2] : memref<36x27xbf16, #tpu.memory_space<vmem>>, vector<36x27xbf16>
    %cst = arith.constant dense<0.000000e+00> : vector<128x27xf32>
    %2 = tpu.matmul %0, %1, %cst {dimension_numbers = #tpu.dot_dimension_numbers<[1], [0], [0], [1], [0, 0, 1, 1], [], []>} : vector<128x36xbf16>, vector<36x27xbf16>, vector<128x27xf32> -> vector<128x27xf32>
    %c0_3 = arith.constant 0 : index
    %c0_4 = arith.constant 0 : index
    %3 = vector.load %arg3[%c0_3, %c0_4] : memref<1x27xf32, #tpu.memory_space<vmem>>, vector<1x27xf32>
    %4 = vector.broadcast %3 : vector<1x27xf32> to vector<128x27xf32>
    %5 = arith.addf %2, %4 : vector<128x27xf32>
    %c0_5 = arith.constant 0 : index
    %c0_6 = arith.constant 0 : index
    %6 = vector.load %arg4[%c0_5, %c0_6] : memref<128x27xf32, #tpu.memory_space<vmem>>, vector<128x27xf32>
    tpu.vector_store %arg4[%c0_5, %c0_6], %5 {strides = array<i32>} : memref<128x27xf32, #tpu.memory_space<vmem>>, vector<128x27xf32>,
    return
  }
  func.func @transform_0(%arg0: i32) -> (i32, i32) {
    %c0_i32 = arith.constant 0 : i32
    %c0_i32_0 = arith.constant 0 : i32
    return %arg0, %c0_i32 : i32, i32
  }
  func.func @transform_1(%arg0: i32) -> (i32, i32) {
    %c0_i32 = arith.constant 0 : i32
    %c0_i32_0 = arith.constant 0 : i32
    %c0_i32_1 = arith.constant 0 : i32
    return %c0_i32, %c0_i32_0 : i32, i32
  }
  func.func @transform_2(%arg0: i32) -> (i32, i32) {
    %c0_i32 = arith.constant 0 : i32
    %c0_i32_0 = arith.constant 0 : i32
    %c0_i32_1 = arith.constant 0 : i32
    return %c0_i32, %c0_i32_0 : i32, i32
  }
  func.func @transform_3(%arg0: i32) -> (i32, i32) {
    %c0_i32 = arith.constant 0 : i32
    %c0_i32_0 = arith.constant 0 : i32
    return %arg0, %c0_i32 : i32, i32
  }
}

module attributes {stable_mosaic.version = 11 : i64} {
  func.func @_fused_mm_kernel(%arg0: i32, %arg1: memref<128x12xbf16, #tpu.memory_space<vmem>>, %arg2: memref<12x8xbf16, #tpu.memory_space<vmem>>, %arg3: memref<1x8xf32, #tpu.memory_space<vmem>>, %arg4: memref<128x8xf32, #tpu.memory_space<vmem>>) attributes {dimension_semantics = [#tpu.dimension_semantics<parallel>], iteration_bounds = array<i64: 4>, scalar_prefetch = 0 : i64, scratch_operands = 0 : i64, tpu.core_type = #tpu.core_type<tc>, window_params = [{transform_indices = @transform_0, window_bounds = array<i64: 128, 12>}, {pipeline_mode = #tpu.pipeline_mode<synchronous>, transform_indices = @transform_1, window_bounds = array<i64: 12, 8>}, {pipeline_mode = #tpu.pipeline_mode<synchronous>, transform_indices = @transform_2, window_bounds = array<i64: 1, 8>}, {transform_indices = @transform_3, window_bounds = array<i64: 128, 8>}]} {
    %c0 = arith.constant 0 : index
    %c0_0 = arith.constant 0 : index
    %0 = vector.load %arg1[%c0, %c0_0] : memref<128x12xbf16, #tpu.memory_space<vmem>>, vector<128x12xbf16>
    %c0_1 = arith.constant 0 : index
    %c0_2 = arith.constant 0 : index
    %1 = vector.load %arg2[%c0_1, %c0_2] : memref<12x8xbf16, #tpu.memory_space<vmem>>, vector<12x8xbf16>
    %cst = arith.constant dense<0.000000e+00> : vector<128x8xf32>
    %2 = tpu.matmul %0, %1, %cst {dimension_numbers = #tpu.dot_dimension_numbers<[1], [0], [0], [1], [0, 0, 1, 1], [], []>} : vector<128x12xbf16>, vector<12x8xbf16>, vector<128x8xf32> -> vector<128x8xf32>
    %c0_3 = arith.constant 0 : index
    %c0_4 = arith.constant 0 : index
    %3 = vector.load %arg3[%c0_3, %c0_4] : memref<1x8xf32, #tpu.memory_space<vmem>>, vector<1x8xf32>
    %4 = vector.broadcast %3 : vector<1x8xf32> to vector<128x8xf32>
    %5 = arith.addf %2, %4 : vector<128x8xf32>
    %6 = arith.negf %5 : vector<128x8xf32>
    %7 = math.exp %6 : vector<128x8xf32>
    %cst_5 = arith.constant 1.000000e+00 : f32
    %8 = vector.broadcast %cst_5 : f32 to vector<128x8xf32>
    %9 = arith.addf %8, %7 : vector<128x8xf32>
    %10 = arith.divf %8, %9 : vector<128x8xf32>
    %11 = arith.mulf %5, %10 : vector<128x8xf32>
    %c0_6 = arith.constant 0 : index
    %c0_7 = arith.constant 0 : index
    %12 = vector.load %arg4[%c0_6, %c0_7] : memref<128x8xf32, #tpu.memory_space<vmem>>, vector<128x8xf32>
    tpu.vector_store %arg4[%c0_6, %c0_7], %11 {strides = array<i32>} : memref<128x8xf32, #tpu.memory_space<vmem>>, vector<128x8xf32>,
    return
  }
  func.func @transform_0(%arg0: i32) -> (i32, i32) {
    %c0_i32 = arith.constant 0 : i32
    %c0_i32_0 = arith.constant 0 : i32
    return %arg0, %c0_i32 : i32, i32
  }
  func.func @transform_1(%arg0: i32) -> (i32, i32) {
    %c0_i32 = arith.constant 0 : i32
    %c0_i32_0 = arith.constant 0 : i32
    %c0_i32_1 = arith.constant 0 : i32
    return %c0_i32, %c0_i32_0 : i32, i32
  }
  func.func @transform_2(%arg0: i32) -> (i32, i32) {
    %c0_i32 = arith.constant 0 : i32
    %c0_i32_0 = arith.constant 0 : i32
    %c0_i32_1 = arith.constant 0 : i32
    return %c0_i32, %c0_i32_0 : i32, i32
  }
  func.func @transform_3(%arg0: i32) -> (i32, i32) {
    %c0_i32 = arith.constant 0 : i32
    %c0_i32_0 = arith.constant 0 : i32
    return %arg0, %c0_i32 : i32, i32
  }
}

module attributes {stable_mosaic.version = 11 : i64} {
  func.func @_fused_mm_kernel(%arg0: i32, %arg1: memref<128x36xbf16, #tpu.memory_space<vmem>>, %arg2: memref<36x4xbf16, #tpu.memory_space<vmem>>, %arg3: memref<1x4xf32, #tpu.memory_space<vmem>>, %arg4: memref<128x4xbf16, #tpu.memory_space<vmem>>) attributes {dimension_semantics = [#tpu.dimension_semantics<parallel>], iteration_bounds = array<i64: 4>, scalar_prefetch = 0 : i64, scratch_operands = 0 : i64, tpu.core_type = #tpu.core_type<tc>, window_params = [{transform_indices = @transform_0, window_bounds = array<i64: 128, 36>}, {pipeline_mode = #tpu.pipeline_mode<synchronous>, transform_indices = @transform_1, window_bounds = array<i64: 36, 4>}, {pipeline_mode = #tpu.pipeline_mode<synchronous>, transform_indices = @transform_2, window_bounds = array<i64: 1, 4>}, {transform_indices = @transform_3, window_bounds = array<i64: 128, 4>}]} {
    %c0 = arith.constant 0 : index
    %c0_0 = arith.constant 0 : index
    %0 = vector.load %arg1[%c0, %c0_0] : memref<128x36xbf16, #tpu.memory_space<vmem>>, vector<128x36xbf16>
    %c0_1 = arith.constant 0 : index
    %c0_2 = arith.constant 0 : index
    %1 = vector.load %arg2[%c0_1, %c0_2] : memref<36x4xbf16, #tpu.memory_space<vmem>>, vector<36x4xbf16>
    %cst = arith.constant dense<0.000000e+00> : vector<128x4xf32>
    %2 = tpu.matmul %0, %1, %cst {dimension_numbers = #tpu.dot_dimension_numbers<[1], [0], [0], [1], [0, 0, 1, 1], [], []>} : vector<128x36xbf16>, vector<36x4xbf16>, vector<128x4xf32> -> vector<128x4xf32>
    %c0_3 = arith.constant 0 : index
    %c0_4 = arith.constant 0 : index
    %3 = vector.load %arg3[%c0_3, %c0_4] : memref<1x4xf32, #tpu.memory_space<vmem>>, vector<1x4xf32>
    %4 = vector.broadcast %3 : vector<1x4xf32> to vector<128x4xf32>
    %5 = arith.addf %2, %4 : vector<128x4xf32>
    %6 = arith.negf %5 : vector<128x4xf32>
    %7 = math.exp %6 : vector<128x4xf32>
    %cst_5 = arith.constant 1.000000e+00 : f32
    %8 = vector.broadcast %cst_5 : f32 to vector<128x4xf32>
    %9 = arith.addf %8, %7 : vector<128x4xf32>
    %10 = arith.divf %8, %9 : vector<128x4xf32>
    %11 = arith.mulf %5, %10 : vector<128x4xf32>
    %12 = arith.truncf %11 : vector<128x4xf32> to vector<128x4xbf16>
    %c0_6 = arith.constant 0 : index
    %c0_7 = arith.constant 0 : index
    %13 = vector.load %arg4[%c0_6, %c0_7] : memref<128x4xbf16, #tpu.memory_space<vmem>>, vector<128x4xbf16>
    tpu.vector_store %arg4[%c0_6, %c0_7], %12 {strides = array<i32>} : memref<128x4xbf16, #tpu.memory_space<vmem>>, vector<128x4xbf16>,
    return
  }
  func.func @transform_0(%arg0: i32) -> (i32, i32) {
    %c0_i32 = arith.constant 0 : i32
    %c0_i32_0 = arith.constant 0 : i32
    return %arg0, %c0_i32 : i32, i32
  }
  func.func @transform_1(%arg0: i32) -> (i32, i32) {
    %c0_i32 = arith.constant 0 : i32
    %c0_i32_0 = arith.constant 0 : i32
    %c0_i32_1 = arith.constant 0 : i32
    return %c0_i32, %c0_i32_0 : i32, i32
  }
  func.func @transform_2(%arg0: i32) -> (i32, i32) {
    %c0_i32 = arith.constant 0 : i32
    %c0_i32_0 = arith.constant 0 : i32
    %c0_i32_1 = arith.constant 0 : i32
    return %c0_i32, %c0_i32_0 : i32, i32
  }
  func.func @transform_3(%arg0: i32) -> (i32, i32) {
    %c0_i32 = arith.constant 0 : i32
    %c0_i32_0 = arith.constant 0 : i32
    return %arg0, %c0_i32 : i32, i32
  }
}

</mosaic_0001>

<llo_original>
// kernel: dcnv2_forward.6
$region0: #{dcnv2_forward.6}
  #allocation0 [shape = 'u32[]', space=smem, size = 0x4, offset = 0x4, fixed_abs, tag = 'smem constant byte address 0x4 - core index']
  #allocation1 [shape = 'u32[144,128]{1,0:T(1,128)}', space=vmem, size = 0x12000, scoped, tag = 'internal scratch']
  %s0 = inlined_call_operand.vmem [shape: bf16[512,8], index: 0, kind: input, shape index: {}]
  %s1 = inlined_call_operand.vmem [shape: bf16[8,8], index: 1, kind: input, shape index: {}]
  %s2 = inlined_call_operand.vmem [shape: f32[1,8], index: 2, kind: input, shape index: {}]
  %s3 = inlined_call_operand.vmem [shape: bf16[512,8], index: 3, kind: output, shape index: {}]
  %s4 = sld [smem:[#allocation0]]
  $region45: #{dcnv2_forward.6} parent=0
    _
  %s6 = ssub.s32 1, %s4
  %s7 = scalar_select 0, %s6, %s4
  loop: start=0, step=1, limit=6
  $region2: #{dcnv2_forward.6} parent=0 // loop_pre_header
    _
  $region3: #{dcnv2_forward.6} parent=0 // loop_header
    %s9 = sphi 0, %s13
    %p10 = scmp.ge.s32.totalorder %s9, 6
    %s19 = sphi 0, %s21
    %s22 = sphi 0, %s19
    %s23 = sphi 0, %s22
    %s39 = sphi 0, %s23
    %s43 = sphi 0, %s43
    %s45 = sphi 0, %s43
    %s46 = sphi 0, %s45
    %s60 = sphi 0, %s46
    %s64 = sphi 0, %s64
    %s66 = sphi 0, %s64
    %s67 = sphi 0, %s66
    %s81 = sphi 0, %s67
    %s87 = sphi 0, %s89
    %s90 = sphi 0, %s87
    %s91 = sphi 0, %s90
    %s107 = sphi 0, %s91
  $region4: #{dcnv2_forward.6} parent=0 // loop_header_branch
    %12 = sbr.rel (%p10) target = $region8
  $region5: #{dcnv2_forward.6} parent=0 // loop_body
    %s14 = ssub.s32 %s9, 1
    %s15 = ssub.s32 %s9, 2
    %s16 = sadd.s32 %s9, 1
    %s17 = ssub.s32 %s9, %s16
    %p18 = scmp.eq.s32.totalorder %s17, 0
    %s20 = sadd.s32 %s19, 1
    %s21 = scalar_select %p18, %s19, %s20
    %p24 = pneg %p18
    %p25 = scmp.eq.s32.totalorder %s9, 3
    %p26 = por %p24, %p25
    %p27 = scmp.ne.s32.totalorder %s19, %s22
    %p28 = scmp.eq.s32.totalorder %s9, 0
    %p29 = por %p27, %p28
    %p30 = scmp.ne.s32.totalorder %s19, %s22
    %p31 = scmp.eq.s32.totalorder %s14, 3
    %p32 = por %p30, %p31
    %p33 = scmp.ne.s32.totalorder %s22, %s23
    %p34 = scmp.eq.s32.totalorder %s14, 0
    %p35 = por %p33, %p34
    %p36 = scmp.ne.s32.totalorder %s22, %s23
    %p37 = scmp.eq.s32.totalorder %s15, 3
    %p38 = por %p36, %p37
    %p40 = scmp.ne.s32.totalorder %s23, %s39
    %p41 = scmp.eq.s32.totalorder %s15, 0
    %p42 = por %p40, %p41
    %s44 = sadd.s32 %s43, 1
    %p47 = scmp.eq.s32.totalorder %s9, 3
    %p48 = scmp.ne.s32.totalorder %s43, %s45
    %p49 = scmp.eq.s32.totalorder %s9, 0
    %p50 = por %p48, %p49
    %p51 = scmp.ne.s32.totalorder %s43, %s45
    %p52 = scmp.eq.s32.totalorder %s14, 3
    %p53 = por %p51, %p52
    %p54 = scmp.ne.s32.totalorder %s45, %s46
    %p55 = scmp.eq.s32.totalorder %s14, 0
    %p56 = por %p54, %p55
    %p57 = scmp.ne.s32.totalorder %s45, %s46
    %p58 = scmp.eq.s32.totalorder %s15, 3
    %p59 = por %p57, %p58
    %p61 = scmp.ne.s32.totalorder %s46, %s60
    %p62 = scmp.eq.s32.totalorder %s15, 0
    %p63 = por %p61, %p62
    %s65 = sadd.s32 %s64, 1
    %p68 = scmp.eq.s32.totalorder %s9, 3
    %p69 = scmp.ne.s32.totalorder %s64, %s66
    %p70 = scmp.eq.s32.totalorder %s9, 0
    %p71 = por %p69, %p70
    %p72 = scmp.ne.s32.totalorder %s64, %s66
    %p73 = scmp.eq.s32.totalorder %s14, 3
    %p74 = por %p72, %p73
    %p75 = scmp.ne.s32.totalorder %s66, %s67
    %p76 = scmp.eq.s32.totalorder %s14, 0
    %p77 = por %p75, %p76
    %p78 = scmp.ne.s32.totalorder %s66, %s67
    %p79 = scmp.eq.s32.totalorder %s15, 3
    %p80 = por %p78, %p79
    %p82 = scmp.ne.s32.totalorder %s67, %s81
    %p83 = scmp.eq.s32.totalorder %s15, 0
    %p84 = por %p82, %p83
    %s85 = ssub.s32 %s9, %s16
    %p86 = scmp.eq.s32.totalorder %s85, 0
    %s88 = sadd.s32 %s87, 1
    %s89 = scalar_select %p86, %s87, %s88
    %p92 = pneg %p86
    %p93 = scmp.eq.s32.totalorder %s9, 3
    %p94 = por %p92, %p93
    %p95 = scmp.ne.s32.totalorder %s87, %s90
    %p96 = scmp.eq.s32.totalorder %s9, 0
    %p97 = por %p95, %p96
    %p98 = scmp.ne.s32.totalorder %s87, %s90
    %p99 = scmp.eq.s32.totalorder %s14, 3
    %p100 = por %p98, %p99
    %p101 = scmp.ne.s32.totalorder %s90, %s91
    %p102 = scmp.eq.s32.totalorder %s14, 0
    %p103 = por %p101, %p102
    %p104 = scmp.ne.s32.totalorder %s90, %s91
    %p105 = scmp.eq.s32.totalorder %s15, 3
    %p106 = por %p104, %p105
    %p108 = scmp.ne.s32.totalorder %s91, %s107
    %p109 = scmp.eq.s32.totalorder %s15, 0
    %p110 = por %p108, %p109
    %p111 = scmp.le.s32.totalorder 1, %s9
    %p112 = scmp.lt.s32.totalorder %s9, 5
    %p113 = pnand %p111, %p112
    %p114 = pneg %p113
    // Predicated region
    $region9: #{dcnv2_forward.6} parent=5 // pred_check
      _
    $region10: #{dcnv2_forward.6} parent=5 // pred_check_branch
      %116 = sbr.rel (%p113) target = $region12
    $region11: #{dcnv2_forward.6} parent=5 // pred_region
      %s117 = ssub.s32 %s9, 1
      // Predicated region
      $region13: #{dcnv2_forward.6} parent=11 // pred_check
        %p118 = pneg %p56
      $region14: #{dcnv2_forward.6} parent=11 // pred_check_branch
        %120 = sbr.rel (%p118) target = $region16
      $region15: #{dcnv2_forward.6} parent=11 // pred_region
        _
      $region16: #{dcnv2_forward.6} parent=11 // pred_fallthru
        _
      // Predicated region
      $region17: #{dcnv2_forward.6} parent=11 // pred_check
        %p121 = pneg %p77
      $region18: #{dcnv2_forward.6} parent=11 // pred_check_branch
        %123 = sbr.rel (%p121) target = $region20
      $region19: #{dcnv2_forward.6} parent=11 // pred_region
        _
      $region20: #{dcnv2_forward.6} parent=11 // pred_fallthru
        _
    $region12: #{dcnv2_forward.6} parent=5 // pred_fallthru
      _
    %p124 = scmp.lt.s32.totalorder %s9, 4
    // Predicated region
    $region21: #{dcnv2_forward.6} parent=5 // pred_check
      %p125 = pneg %p124
    $region22: #{dcnv2_forward.6} parent=5 // pred_check_branch
      %127 = sbr.rel (%p125) target = $region24
    $region23: #{dcnv2_forward.6} parent=5 // pred_region
      // Predicated region
      $region25: #{dcnv2_forward.6} parent=23 // pred_check
        %p128 = pneg %p29
      $region26: #{dcnv2_forward.6} parent=23 // pred_check_branch
        %130 = sbr.rel (%p128) target = $region28
      $region27: #{dcnv2_forward.6} parent=23 // pred_region
        %s131 = smul.u32 16, %s9
        %p132 = scmp.lt.s32.totalorder %s131, 63
        %s133 = scalar_select %p132, %s131, 63
        %s134 = smul.addr %s133, 4
        %s135 = scalar_lea.vmem %s0, %s134
        %s136 = smul.u32 16, %s9
      $region28: #{dcnv2_forward.6} parent=23 // pred_fallthru
        _
    $region24: #{dcnv2_forward.6} parent=5 // pred_fallthru
      _
    %p137 = scmp.le.s32.totalorder 1, %s9
    %p138 = scmp.lt.s32.totalorder %s9, 5
    %p139 = pnand %p137, %p138
    %p140 = pneg %p139
    // Predicated region
    $region29: #{dcnv2_forward.6} parent=5 // pred_check
      _
    $region30: #{dcnv2_forward.6} parent=5 // pred_check_branch
      %142 = sbr.rel (%p139) target = $region32
    $region31: #{dcnv2_forward.6} parent=5 // pred_region
      %s143 = ssub.s32 %s9, 1
      %s144 = smul.u32 16, %s14
      %p145 = scmp.lt.s32.totalorder %s144, 63
      %s146 = scalar_select %p145, %s144, 63
      %s147 = smul.addr %s146, 4
      %s148 = scalar_lea.vmem %s0, %s147
      %p149 = pneg %p35
      %p150 = pneg %p32
      %p151 = pneg %p56
      %p152 = pneg %p53
      %p153 = pneg %p77
      %p154 = pneg %p74
      %p155 = pneg %p103
      %p156 = pneg %p100
      %s157 = smul.u32 16, %s14
      %p158 = scmp.lt.s32.totalorder %s157, 63
      %s159 = scalar_select %p158, %s157, 63
      %s160 = smul.addr %s159, 4
      %s161 = scalar_lea.vmem %s3, %s160
      %s162 = smul.u32 16, %s14
      %p163 = scmp.lt.s32.totalorder %s162, 63
      %s164 = scalar_select %p163, %s162, 63
      %s165 = smul.addr %s164, 4
      %s166 = scalar_lea.vmem %s0, %s165
      %s167 = smul.u32 16, %s14
      %s168 = smul.u32 16, %s14
      %p169 = scmp.lt.s32.totalorder %s168, 63
      %s170 = scalar_select %p169, %s168, 63
      %s171 = smul.addr %s170, 4
      %s172 = scalar_lea.vmem %s3, %s171
      %s173 = smul.u32 16, %s14
      %v175 = vld [vmem:[%s166] sm:$0xf]
      %v176 = vld [vmem:[%s166 + $0x4] sm:$0xf]
      %v177 = vld [vmem:[%s166 + $0x8] sm:$0xf]
      %v178 = vld [vmem:[%s166 + $0xc] sm:$0xf]
      %v179 = vld [vmem:[%s166 + $0x10] sm:$0xf]
      %v180 = vld [vmem:[%s166 + $0x14] sm:$0xf]
      %v181 = vld [vmem:[%s166 + $0x18] sm:$0xf]
      %v182 = vld [vmem:[%s166 + $0x1c] sm:$0xf]
      %v183 = vld [vmem:[%s166 + $0x20] sm:$0xf]
      %v184 = vld [vmem:[%s166 + $0x24] sm:$0xf]
      %v185 = vld [vmem:[%s166 + $0x28] sm:$0xf]
      %v186 = vld [vmem:[%s166 + $0x2c] sm:$0xf]
      %v187 = vld [vmem:[%s166 + $0x30] sm:$0xf]
      %v188 = vld [vmem:[%s166 + $0x34] sm:$0xf]
      %v189 = vld [vmem:[%s166 + $0x38] sm:$0xf]
      %v190 = vld [vmem:[%s166 + $0x3c] sm:$0xf]
      %v191 = vld [vmem:[%s1] sm:$0xf]
      %v192 = vld [vmem:[%s2] sm:$0x1]
      %v194 = vlaneseq
      %v195 = vshrl.u32 %v194, 7
      %v196 = vsub.s32 0, %v195
      %v197 = vrot.slane %v192, %v196
      %v215 = vunpack.c.l.b16 %v175
      %v216 = vunpack.c.l.b16 %v176
      %v217 = vunpack.c.l.b16 %v177
      %v218 = vunpack.c.l.b16 %v178
      %v219 = vunpack.c.l.b16 %v179
      %v220 = vunpack.c.l.b16 %v180
      %v221 = vunpack.c.l.b16 %v181
      %v222 = vunpack.c.l.b16 %v182
      %v223 = vunpack.c.l.b16 %v183
      %v224 = vunpack.c.l.b16 %v184
      %v225 = vunpack.c.l.b16 %v185
      %v226 = vunpack.c.l.b16 %v186
      %v227 = vunpack.c.l.b16 %v187
      %v228 = vunpack.c.l.b16 %v188
      %v229 = vunpack.c.l.b16 %v189
      %v230 = vunpack.c.l.b16 %v190
      %v231 = vpack.c.b16 %v216, %v215
      %v232 = vpack.c.b16 %v218, %v217
      %v233 = vpack.c.b16 %v220, %v219
      %v234 = vpack.c.b16 %v222, %v221
      %v235 = vpack.c.b16 %v224, %v223
      %v236 = vpack.c.b16 %v226, %v225
      %v237 = vpack.c.b16 %v228, %v227
      %v238 = vpack.c.b16 %v230, %v229
      %vm239 = vcmask 64512
      %v241 = vsel %vm239, %v231, 0
      %v244 = vsel %vm239, %v232, 0
      %v247 = vsel %vm239, %v233, 0
      %v250 = vsel %vm239, %v234, 0
      %v253 = vsel %vm239, %v235, 0
      %v256 = vsel %vm239, %v236, 0
      %v259 = vsel %vm239, %v237, 0
      %v262 = vsel %vm239, %v238, 0
      %vm264 = vcmask 1043456
      %v266 = vsel %vm264, %v191, 0
      %268 = vmatprep.subr.bf16.mxu0 0
      %269 = vmatpush1.bf16.msra.mxu0 %v266
      %270 = vmatprep.subr.bf16.mxu0 0
      %271 = vmatpush1.bf16.msra.mxu0 0
      %272 = vmatprep.subr.bf16.mxu0 0
      %273 = vmatpush1.bf16.msra.mxu0 0
      %274 = vmatprep.subr.bf16.mxu0 0
      %275 = vmatpush1.bf16.msra.mxu0 0
      %276 = vmatprep.subr.bf16.mxu0 0
      %277 = vmatpush1.bf16.msra.mxu0 0
      %278 = vmatprep.subr.bf16.mxu0 0
      %279 = vmatpush1.bf16.msra.mxu0 0
      %280 = vmatprep.subr.bf16.mxu0 0
      %281 = vmatpush1.bf16.msra.mxu0 0
      %282 = vmatprep.subr.bf16.mxu0 0
      %283 = vmatpush1.bf16.msra.mxu0 0
      %284 = vmatprep.subr.bf16.mxu0 0
      %285 = vmatpush1.bf16.msra.mxu0 0
      %286 = vmatprep.subr.bf16.mxu0 0
      %287 = vmatpush1.bf16.msra.mxu0 0
      %288 = vmatprep.subr.bf16.mxu0 0
      %289 = vmatpush1.bf16.msra.mxu0 0
      %290 = vmatprep.subr.bf16.mxu0 0
      %291 = vmatpush1.bf16.msra.mxu0 0
      %292 = vmatprep.subr.bf16.mxu0 0
      %293 = vmatpush1.bf16.msra.mxu0 0
      %294 = vmatprep.subr.bf16.mxu0 0
      %295 = vmatpush1.bf16.msra.mxu0 0
      %296 = vmatprep.subr.bf16.mxu0 0
      %297 = vmatpush1.bf16.msra.mxu0 0
      %298 = vmatprep.subr.bf16.mxu0 0
      %299 = vmatpush1.bf16.msra.mxu0 0
      %300 = vmatprep.mubr.bf16.mxu0 0
      %301 = vmatmul.mubr.bf16.gmra.mrb[0].mxu0 %v241
      %v302 = vpop.f32.mrb[0].mxu0
      %v303 = vadd.f32 %v197, %v302
      %v304 = vpop.f32.mrb[0].mxu0
      %v305 = vpop.f32.mrb[0].mxu0
      %v306 = vadd.f32 %v197, %v305
      %v307 = vpop.f32.mrb[0].mxu0
      %308 = vmatprep.mubr.bf16.mxu0 0
      %309 = vmatmul.mubr.bf16.gmra.mrb[0].mxu0 %v244
      %v310 = vpop.f32.mrb[0].mxu0
      %v311 = vadd.f32 %v197, %v310
      %v312 = vpop.f32.mrb[0].mxu0
      %v313 = vpop.f32.mrb[0].mxu0
      %v314 = vadd.f32 %v197, %v313
      %v315 = vpop.f32.mrb[0].mxu0
      %316 = vmatprep.mubr.bf16.mxu0 0
      %317 = vmatmul.mubr.bf16.gmra.mrb[0].mxu0 %v247
      %v318 = vpop.f32.mrb[0].mxu0
      %v319 = vadd.f32 %v197, %v318
      %v320 = vpop.f32.mrb[0].mxu0
      %v321 = vpop.f32.mrb[0].mxu0
      %v322 = vadd.f32 %v197, %v321
      %v323 = vpop.f32.mrb[0].mxu0
      %324 = vmatprep.mubr.bf16.mxu0 0
      %325 = vmatmul.mubr.bf16.gmra.mrb[0].mxu0 %v250
      %v326 = vpop.f32.mrb[0].mxu0
      %v327 = vadd.f32 %v197, %v326
      %v328 = vpop.f32.mrb[0].mxu0
      %v329 = vpop.f32.mrb[0].mxu0
      %v330 = vadd.f32 %v197, %v329
      %v331 = vpop.f32.mrb[0].mxu0
      %332 = vmatprep.mubr.bf16.mxu0 0
      %333 = vmatmul.mubr.bf16.gmra.mrb[0].mxu0 %v253
      %v334 = vpop.f32.mrb[0].mxu0
      %v335 = vadd.f32 %v197, %v334
      %v336 = vpop.f32.mrb[0].mxu0
      %v337 = vpop.f32.mrb[0].mxu0
      %v338 = vadd.f32 %v197, %v337
      %v339 = vpop.f32.mrb[0].mxu0
      %340 = vmatprep.mubr.bf16.mxu0 0
      %341 = vmatmul.mubr.bf16.gmra.mrb[0].mxu0 %v256
      %v342 = vpop.f32.mrb[0].mxu0
      %v343 = vadd.f32 %v197, %v342
      %v344 = vpop.f32.mrb[0].mxu0
      %v345 = vpop.f32.mrb[0].mxu0
      %v346 = vadd.f32 %v197, %v345
      %v347 = vpop.f32.mrb[0].mxu0
      %348 = vmatprep.mubr.bf16.mxu0 0
      %349 = vmatmul.mubr.bf16.gmra.mrb[0].mxu0 %v259
      %v350 = vpop.f32.mrb[0].mxu0
      %v351 = vadd.f32 %v197, %v350
      %v352 = vpop.f32.mrb[0].mxu0
      %v353 = vpop.f32.mrb[0].mxu0
      %v354 = vadd.f32 %v197, %v353
      %v355 = vpop.f32.mrb[0].mxu0
      %356 = vmatprep.mubr.bf16.mxu0 0
      %357 = vmatmul.mubr.bf16.gmra.mrb[0].mxu0 %v262
      %v358 = vpop.f32.mrb[0].mxu0
      %v359 = vadd.f32 %v197, %v358
      %v360 = vpop.f32.mrb[0].mxu0
      %v361 = vpop.f32.mrb[0].mxu0
      %v362 = vadd.f32 %v197, %v361
      %v363 = vpop.f32.mrb[0].mxu0
      %364 = vdwg.mxu0
      %v365 = vxor.u32 %v303, 2147483648
      %v366 = vxor.u32 %v306, 2147483648
      %v367 = vxor.u32 %v311, 2147483648
      %v368 = vxor.u32 %v314, 2147483648
      %v369 = vxor.u32 %v319, 2147483648
      %v370 = vxor.u32 %v322, 2147483648
      %v371 = vxor.u32 %v327, 2147483648
      %v372 = vxor.u32 %v330, 2147483648
      %v373 = vxor.u32 %v335, 2147483648
      %v374 = vxor.u32 %v338, 2147483648
      %v375 = vxor.u32 %v343, 2147483648
      %v376 = vxor.u32 %v346, 2147483648
      %v377 = vxor.u32 %v351, 2147483648
      %v378 = vxor.u32 %v354, 2147483648
      %v379 = vxor.u32 %v359, 2147483648
      %v380 = vxor.u32 %v362, 2147483648
      %v381 = vmul.f32 %v365, 1.442695
      %v382 = vpow.pop %v381
      %v383 = vmul.f32 %v366, 1.442695
      %v384 = vpow.pop %v383
      %v385 = vmul.f32 %v367, 1.442695
      %v386 = vpow.pop %v385
      %v387 = vmul.f32 %v368, 1.442695
      %v388 = vpow.pop %v387
      %v389 = vmul.f32 %v369, 1.442695
      %v390 = vpow.pop %v389
      %v391 = vmul.f32 %v370, 1.442695
      %v392 = vpow.pop %v391
      %v393 = vmul.f32 %v371, 1.442695
      %v394 = vpow.pop %v393
      %v395 = vmul.f32 %v372, 1.442695
      %v396 = vpow.pop %v395
      %v397 = vmul.f32 %v373, 1.442695
      %v398 = vpow.pop %v397
      %v399 = vmul.f32 %v374, 1.442695
      %v400 = vpow.pop %v399
      %v401 = vmul.f32 %v375, 1.442695
      %v402 = vpow.pop %v401
      %v403 = vmul.f32 %v376, 1.442695
      %v404 = vpow.pop %v403
      %v405 = vmul.f32 %v377, 1.442695
      %v406 = vpow.pop %v405
      %v407 = vmul.f32 %v378, 1.442695
      %v408 = vpow.pop %v407
      %v409 = vmul.f32 %v379, 1.442695
      %v410 = vpow.pop %v409
      %v411 = vmul.f32 %v380, 1.442695
      %v412 = vpow.pop %v411
      %v413 = vadd.f32 %v382, 1.0
      %v414 = vadd.f32 %v384, 1.0
      %v415 = vadd.f32 %v386, 1.0
      %v416 = vadd.f32 %v388, 1.0
      %v417 = vadd.f32 %v390, 1.0
      %v418 = vadd.f32 %v392, 1.0
      %v419 = vadd.f32 %v394, 1.0
      %v420 = vadd.f32 %v396, 1.0
      %v421 = vadd.f32 %v398, 1.0
      %v422 = vadd.f32 %v400, 1.0
      %v423 = vadd.f32 %v402, 1.0
      %v424 = vadd.f32 %v404, 1.0
      %v425 = vadd.f32 %v406, 1.0
      %v426 = vadd.f32 %v408, 1.0
      %v427 = vadd.f32 %v410, 1.0
      %v428 = vadd.f32 %v412, 1.0
      %v429 = vrcp.pop %v413
      %v430 = vmul.f32 1.0, %v429
      %v431 = vrcp.pop %v414
      %v432 = vmul.f32 1.0, %v431
      %v433 = vrcp.pop %v415
      %v434 = vmul.f32 1.0, %v433
      %v435 = vrcp.pop %v416
      %v436 = vmul.f32 1.0, %v435
      %v437 = vrcp.pop %v417
      %v438 = vmul.f32 1.0, %v437
      %v439 = vrcp.pop %v418
      %v440 = vmul.f32 1.0, %v439
      %v441 = vrcp.pop %v419
      %v442 = vmul.f32 1.0, %v441
      %v443 = vrcp.pop %v420
      %v444 = vmul.f32 1.0, %v443
      %v445 = vrcp.pop %v421
      %v446 = vmul.f32 1.0, %v445
      %v447 = vrcp.pop %v422
      %v448 = vmul.f32 1.0, %v447
      %v449 = vrcp.pop %v423
      %v450 = vmul.f32 1.0, %v449
      %v451 = vrcp.pop %v424
      %v452 = vmul.f32 1.0, %v451
      %v453 = vrcp.pop %v425
      %v454 = vmul.f32 1.0, %v453
      %v455 = vrcp.pop %v426
      %v456 = vmul.f32 1.0, %v455
      %v457 = vrcp.pop %v427
      %v458 = vmul.f32 1.0, %v457
      %v459 = vrcp.pop %v428
      %v460 = vmul.f32 1.0, %v459
      %v461 = vmul.f32 %v303, %v430
      %v462 = vmul.f32 %v306, %v432
      %v463 = vmul.f32 %v311, %v434
      %v464 = vmul.f32 %v314, %v436
      %v465 = vmul.f32 %v319, %v438
      %v466 = vmul.f32 %v322, %v440
      %v467 = vmul.f32 %v327, %v442
      %v468 = vmul.f32 %v330, %v444
      %v469 = vmul.f32 %v335, %v446
      %v470 = vmul.f32 %v338, %v448
      %v471 = vmul.f32 %v343, %v450
      %v472 = vmul.f32 %v346, %v452
      %v473 = vmul.f32 %v351, %v454
      %v474 = vmul.f32 %v354, %v456
      %v475 = vmul.f32 %v359, %v458
      %v476 = vmul.f32 %v362, %v460
      %v477 = vpack.c.bf16 %v462, %v461
      %v478 = vpack.c.bf16 %v464, %v463
      %v479 = vpack.c.bf16 %v466, %v465
      %v480 = vpack.c.bf16 %v468, %v467
      %v481 = vpack.c.bf16 %v470, %v469
      %v482 = vpack.c.bf16 %v472, %v471
      %v483 = vpack.c.bf16 %v474, %v473
      %v484 = vpack.c.bf16 %v476, %v475
      %v493 = vunpack.c.l.b16 %v477
      %v494 = vunpack.c.h.b16 %v477
      %v495 = vunpack.c.l.b16 %v478
      %v496 = vunpack.c.h.b16 %v478
      %v497 = vunpack.c.l.b16 %v479
      %v498 = vunpack.c.h.b16 %v479
      %v499 = vunpack.c.l.b16 %v480
      %v500 = vunpack.c.h.b16 %v480
      %v501 = vunpack.c.l.b16 %v481
      %v502 = vunpack.c.h.b16 %v481
      %v503 = vunpack.c.l.b16 %v482
      %v504 = vunpack.c.h.b16 %v482
      %v505 = vunpack.c.l.b16 %v483
      %v506 = vunpack.c.h.b16 %v483
      %v507 = vunpack.c.l.b16 %v484
      %v508 = vunpack.c.h.b16 %v484
      %v509 = vpack.c.b16 %v493, %v493
      %v510 = vpack.c.b16 %v494, %v494
      %v511 = vpack.c.b16 %v495, %v495
      %v512 = vpack.c.b16 %v496, %v496
      %v513 = vpack.c.b16 %v497, %v497
      %v514 = vpack.c.b16 %v498, %v498
      %v515 = vpack.c.b16 %v499, %v499
      %v516 = vpack.c.b16 %v500, %v500
      %v517 = vpack.c.b16 %v501, %v501
      %v518 = vpack.c.b16 %v502, %v502
      %v519 = vpack.c.b16 %v503, %v503
      %v520 = vpack.c.b16 %v504, %v504
      %v521 = vpack.c.b16 %v505, %v505
      %v522 = vpack.c.b16 %v506, %v506
      %v523 = vpack.c.b16 %v507, %v507
      %v524 = vpack.c.b16 %v508, %v508
      %vm541 = vcmask 60416
      %542 = vst.msk [vmem:[%s172] sm:$0xf] %vm541, %v509
      %543 = vst.msk [vmem:[%s172 + $0x4] sm:$0xf] %vm541, %v510
      %544 = vst.msk [vmem:[%s172 + $0x8] sm:$0xf] %vm541, %v511
      %545 = vst.msk [vmem:[%s172 + $0xc] sm:$0xf] %vm541, %v512
      %546 = vst.msk [vmem:[%s172 + $0x10] sm:$0xf] %vm541, %v513
      %547 = vst.msk [vmem:[%s172 + $0x14] sm:$0xf] %vm541, %v514
      %548 = vst.msk [vmem:[%s172 + $0x18] sm:$0xf] %vm541, %v515
      %549 = vst.msk [vmem:[%s172 + $0x1c] sm:$0xf] %vm541, %v516
      %550 = vst.msk [vmem:[%s172 + $0x20] sm:$0xf] %vm541, %v517
      %551 = vst.msk [vmem:[%s172 + $0x24] sm:$0xf] %vm541, %v518
      %552 = vst.msk [vmem:[%s172 + $0x28] sm:$0xf] %vm541, %v519
      %553 = vst.msk [vmem:[%s172 + $0x2c] sm:$0xf] %vm541, %v520
      %554 = vst.msk [vmem:[%s172 + $0x30] sm:$0xf] %vm541, %v521
      %555 = vst.msk [vmem:[%s172 + $0x34] sm:$0xf] %vm541, %v522
      %556 = vst.msk [vmem:[%s172 + $0x38] sm:$0xf] %vm541, %v523
      %557 = vst.msk [vmem:[%s172 + $0x3c] sm:$0xf] %vm541, %v524
      %s558 = smul.u32 16, %s14
      %p559 = scmp.lt.s32.totalorder %s558, 63
      %s560 = scalar_select %p559, %s558, 63
      %s561 = smul.addr %s560, 4
      %s562 = scalar_lea.vmem %s3, %s561
      // Predicated region
      $region33: #{dcnv2_forward.6} parent=31 // pred_check
        %p563 = pneg %p100
      $region34: #{dcnv2_forward.6} parent=31 // pred_check_branch
        %565 = sbr.rel (%p563) target = $region36
      $region35: #{dcnv2_forward.6} parent=31 // pred_region
        %s566 = smul.u32 16, %s14
      $region36: #{dcnv2_forward.6} parent=31 // pred_fallthru
        _
    $region32: #{dcnv2_forward.6} parent=5 // pred_fallthru
      _
    %p567 = scmp.le.s32.totalorder 2, %s9
    // Predicated region
    $region37: #{dcnv2_forward.6} parent=5 // pred_check
      %p568 = pneg %p567
    $region38: #{dcnv2_forward.6} parent=5 // pred_check_branch
      %570 = sbr.rel (%p568) target = $region40
    $region39: #{dcnv2_forward.6} parent=5 // pred_region
      %s571 = ssub.s32 %s9, 2
      // Predicated region
      $region41: #{dcnv2_forward.6} parent=39 // pred_check
        %p572 = pneg %p106
      $region42: #{dcnv2_forward.6} parent=39 // pred_check_branch
        %574 = sbr.rel (%p572) target = $region44
      $region43: #{dcnv2_forward.6} parent=39 // pred_region
        %s575 = smul.u32 16, %s15
        %p576 = scmp.lt.s32.totalorder %s575, 63
        %s577 = scalar_select %p576, %s575, 63
        %s578 = smul.addr %s577, 4
        %s579 = scalar_lea.vmem %s3, %s578
      $region44: #{dcnv2_forward.6} parent=39 // pred_fallthru
        _
    $region40: #{dcnv2_forward.6} parent=5 // pred_fallthru
      _
  $region6: #{dcnv2_forward.6} parent=0 // loop_footer
    %s13 = sadd.s32 1, %s9
  $region7: #{dcnv2_forward.6} parent=0 // loop_footer_branch
    %8 = sbr.rel target = $region3
  $region8: #{dcnv2_forward.6} parent=0 // loop_exit
    _

// kernel: dcnv2_forward.7
$region0: #{dcnv2_forward.7}
  #allocation0 [shape = 'u32[]', space=smem, size = 0x4, offset = 0x4, fixed_abs, tag = 'smem constant byte address 0x4 - core index']
  #allocation1 [shape = 'u32[144,128]{1,0:T(1,128)}', space=vmem, size = 0x12000, scoped, tag = 'internal scratch']
  %s0 = inlined_call_operand.vmem [shape: bf16[512,36], index: 0, kind: input, shape index: {}]
  %s1 = inlined_call_operand.vmem [shape: bf16[36,27], index: 1, kind: input, shape index: {}]
  %s2 = inlined_call_operand.vmem [shape: f32[1,27], index: 2, kind: input, shape index: {}]
  %s3 = inlined_call_operand.vmem [shape: f32[512,27], index: 3, kind: output, shape index: {}]
  %s4 = sld [smem:[#allocation0]]
  $region45: #{dcnv2_forward.7} parent=0
    _
  %s6 = ssub.s32 1, %s4
  %s7 = scalar_select 0, %s6, %s4
  loop: start=0, step=1, limit=6
  $region2: #{dcnv2_forward.7} parent=0 // loop_pre_header
    _
  $region3: #{dcnv2_forward.7} parent=0 // loop_header
    %s9 = sphi 0, %s13
    %p10 = scmp.ge.s32.totalorder %s9, 6
    %s19 = sphi 0, %s21
    %s22 = sphi 0, %s19
    %s23 = sphi 0, %s22
    %s39 = sphi 0, %s23
    %s43 = sphi 0, %s43
    %s45 = sphi 0, %s43
    %s46 = sphi 0, %s45
    %s60 = sphi 0, %s46
    %s64 = sphi 0, %s64
    %s66 = sphi 0, %s64
    %s67 = sphi 0, %s66
    %s81 = sphi 0, %s67
    %s87 = sphi 0, %s89
    %s90 = sphi 0, %s87
    %s91 = sphi 0, %s90
    %s107 = sphi 0, %s91
  $region4: #{dcnv2_forward.7} parent=0 // loop_header_branch
    %12 = sbr.rel (%p10) target = $region8
  $region5: #{dcnv2_forward.7} parent=0 // loop_body
    %s14 = ssub.s32 %s9, 1
    %s15 = ssub.s32 %s9, 2
    %s16 = sadd.s32 %s9, 1
    %s17 = ssub.s32 %s9, %s16
    %p18 = scmp.eq.s32.totalorder %s17, 0
    %s20 = sadd.s32 %s19, 1
    %s21 = scalar_select %p18, %s19, %s20
    %p24 = pneg %p18
    %p25 = scmp.eq.s32.totalorder %s9, 3
    %p26 = por %p24, %p25
    %p27 = scmp.ne.s32.totalorder %s19, %s22
    %p28 = scmp.eq.s32.totalorder %s9, 0
    %p29 = por %p27, %p28
    %p30 = scmp.ne.s32.totalorder %s19, %s22
    %p31 = scmp.eq.s32.totalorder %s14, 3
    %p32 = por %p30, %p31
    %p33 = scmp.ne.s32.totalorder %s22, %s23
    %p34 = scmp.eq.s32.totalorder %s14, 0
    %p35 = por %p33, %p34
    %p36 = scmp.ne.s32.totalorder %s22, %s23
    %p37 = scmp.eq.s32.totalorder %s15, 3
    %p38 = por %p36, %p37
    %p40 = scmp.ne.s32.totalorder %s23, %s39
    %p41 = scmp.eq.s32.totalorder %s15, 0
    %p42 = por %p40, %p41
    %s44 = sadd.s32 %s43, 1
    %p47 = scmp.eq.s32.totalorder %s9, 3
    %p48 = scmp.ne.s32.totalorder %s43, %s45
    %p49 = scmp.eq.s32.totalorder %s9, 0
    %p50 = por %p48, %p49
    %p51 = scmp.ne.s32.totalorder %s43, %s45
    %p52 = scmp.eq.s32.totalorder %s14, 3
    %p53 = por %p51, %p52
    %p54 = scmp.ne.s32.totalorder %s45, %s46
    %p55 = scmp.eq.s32.totalorder %s14, 0
    %p56 = por %p54, %p55
    %p57 = scmp.ne.s32.totalorder %s45, %s46
    %p58 = scmp.eq.s32.totalorder %s15, 3
    %p59 = por %p57, %p58
    %p61 = scmp.ne.s32.totalorder %s46, %s60
    %p62 = scmp.eq.s32.totalorder %s15, 0
    %p63 = por %p61, %p62
    %s65 = sadd.s32 %s64, 1
    %p68 = scmp.eq.s32.totalorder %s9, 3
    %p69 = scmp.ne.s32.totalorder %s64, %s66
    %p70 = scmp.eq.s32.totalorder %s9, 0
    %p71 = por %p69, %p70
    %p72 = scmp.ne.s32.totalorder %s64, %s66
    %p73 = scmp.eq.s32.totalorder %s14, 3
    %p74 = por %p72, %p73
    %p75 = scmp.ne.s32.totalorder %s66, %s67
    %p76 = scmp.eq.s32.totalorder %s14, 0
    %p77 = por %p75, %p76
    %p78 = scmp.ne.s32.totalorder %s66, %s67
    %p79 = scmp.eq.s32.totalorder %s15, 3
    %p80 = por %p78, %p79
    %p82 = scmp.ne.s32.totalorder %s67, %s81
    %p83 = scmp.eq.s32.totalorder %s15, 0
    %p84 = por %p82, %p83
    %s85 = ssub.s32 %s9, %s16
    %p86 = scmp.eq.s32.totalorder %s85, 0
    %s88 = sadd.s32 %s87, 1
    %s89 = scalar_select %p86, %s87, %s88
    %p92 = pneg %p86
    %p93 = scmp.eq.s32.totalorder %s9, 3
    %p94 = por %p92, %p93
    %p95 = scmp.ne.s32.totalorder %s87, %s90
    %p96 = scmp.eq.s32.totalorder %s9, 0
    %p97 = por %p95, %p96
    %p98 = scmp.ne.s32.totalorder %s87, %s90
    %p99 = scmp.eq.s32.totalorder %s14, 3
    %p100 = por %p98, %p99
    %p101 = scmp.ne.s32.totalorder %s90, %s91
    %p102 = scmp.eq.s32.totalorder %s14, 0
    %p103 = por %p101, %p102
    %p104 = scmp.ne.s32.totalorder %s90, %s91
    %p105 = scmp.eq.s32.totalorder %s15, 3
    %p106 = por %p104, %p105
    %p108 = scmp.ne.s32.totalorder %s91, %s107
    %p109 = scmp.eq.s32.totalorder %s15, 0
    %p110 = por %p108, %p109
    %p111 = scmp.le.s32.totalorder 1, %s9
    %p112 = scmp.lt.s32.totalorder %s9, 5
    %p113 = pnand %p111, %p112
    %p114 = pneg %p113
    // Predicated region
    $region9: #{dcnv2_forward.7} parent=5 // pred_check
      _
    $region10: #{dcnv2_forward.7} parent=5 // pred_check_branch
      %116 = sbr.rel (%p113) target = $region12
    $region11: #{dcnv2_forward.7} parent=5 // pred_region
      %s117 = ssub.s32 %s9, 1
      // Predicated region
      $region13: #{dcnv2_forward.7} parent=11 // pred_check
        %p118 = pneg %p56
      $region14: #{dcnv2_forward.7} parent=11 // pred_check_branch
        %120 = sbr.rel (%p118) target = $region16
      $region15: #{dcnv2_forward.7} parent=11 // pred_region
        _
      $region16: #{dcnv2_forward.7} parent=11 // pred_fallthru
        _
      // Predicated region
      $region17: #{dcnv2_forward.7} parent=11 // pred_check
        %p121 = pneg %p77
      $region18: #{dcnv2_forward.7} parent=11 // pred_check_branch
        %123 = sbr.rel (%p121) target = $region20
      $region19: #{dcnv2_forward.7} parent=11 // pred_region
        _
      $region20: #{dcnv2_forward.7} parent=11 // pred_fallthru
        _
    $region12: #{dcnv2_forward.7} parent=5 // pred_fallthru
      _
    %p124 = scmp.lt.s32.totalorder %s9, 4
    // Predicated region
    $region21: #{dcnv2_forward.7} parent=5 // pred_check
      %p125 = pneg %p124
    $region22: #{dcnv2_forward.7} parent=5 // pred_check_branch
      %127 = sbr.rel (%p125) target = $region24
    $region23: #{dcnv2_forward.7} parent=5 // pred_region
      // Predicated region
      $region25: #{dcnv2_forward.7} parent=23 // pred_check
        %p128 = pneg %p29
      $region26: #{dcnv2_forward.7} parent=23 // pred_check_branch
        %130 = sbr.rel (%p128) target = $region28
      $region27: #{dcnv2_forward.7} parent=23 // pred_region
        %s131 = smul.u32 16, %s9
        %p132 = scmp.lt.s32.totalorder %s131, 63
        %s133 = scalar_select %p132, %s131, 63
        %s134 = smul.addr %s133, 4
        %s135 = scalar_lea.vmem %s0, %s134
        %s136 = smul.u32 16, %s9
      $region28: #{dcnv2_forward.7} parent=23 // pred_fallthru
        _
    $region24: #{dcnv2_forward.7} parent=5 // pred_fallthru
      _
    %p137 = scmp.le.s32.totalorder 1, %s9
    %p138 = scmp.lt.s32.totalorder %s9, 5
    %p139 = pnand %p137, %p138
    %p140 = pneg %p139
    // Predicated region
    $region29: #{dcnv2_forward.7} parent=5 // pred_check
      _
    $region30: #{dcnv2_forward.7} parent=5 // pred_check_branch
      %142 = sbr.rel (%p139) target = $region32
    $region31: #{dcnv2_forward.7} parent=5 // pred_region
      %s143 = ssub.s32 %s9, 1
      %s144 = smul.u32 16, %s14
      %p145 = scmp.lt.s32.totalorder %s144, 63
      %s146 = scalar_select %p145, %s144, 63
      %s147 = smul.addr %s146, 4
      %s148 = scalar_lea.vmem %s0, %s147
      %p149 = pneg %p35
      %p150 = pneg %p32
      %p151 = pneg %p56
      %p152 = pneg %p53
      %p153 = pneg %p77
      %p154 = pneg %p74
      %p155 = pneg %p103
      %p156 = pneg %p100
      %s157 = smul.u32 16, %s14
      %p158 = scmp.lt.s32.totalorder %s157, 63
      %s159 = scalar_select %p158, %s157, 63
      %s160 = smul.addr %s159, 8
      %s161 = scalar_lea.vmem %s3, %s160
      %s162 = smul.u32 16, %s14
      %p163 = scmp.lt.s32.totalorder %s162, 63
      %s164 = scalar_select %p163, %s162, 63
      %s165 = smul.addr %s164, 4
      %s166 = scalar_lea.vmem %s0, %s165
      %s167 = smul.u32 16, %s14
      %s168 = smul.u32 16, %s14
      %p169 = scmp.lt.s32.totalorder %s168, 63
      %s170 = scalar_select %p169, %s168, 63
      %s171 = smul.addr %s170, 8
      %s172 = scalar_lea.vmem %s3, %s171
      %s173 = smul.u32 16, %s14
      %v175 = vld [vmem:[%s166] sm:$0xf]
      %v176 = vld [vmem:[%s166 + $0x4] sm:$0xf]
      %v177 = vld [vmem:[%s166 + $0x8] sm:$0xf]
      %v178 = vld [vmem:[%s166 + $0xc] sm:$0xf]
      %v179 = vld [vmem:[%s166 + $0x10] sm:$0xf]
      %v180 = vld [vmem:[%s166 + $0x14] sm:$0xf]
      %v181 = vld [vmem:[%s166 + $0x18] sm:$0xf]
      %v182 = vld [vmem:[%s166 + $0x1c] sm:$0xf]
      %v183 = vld [vmem:[%s166 + $0x20] sm:$0xf]
      %v184 = vld [vmem:[%s166 + $0x24] sm:$0xf]
      %v185 = vld [vmem:[%s166 + $0x28] sm:$0xf]
      %v186 = vld [vmem:[%s166 + $0x2c] sm:$0xf]
      %v187 = vld [vmem:[%s166 + $0x30] sm:$0xf]
      %v188 = vld [vmem:[%s166 + $0x34] sm:$0xf]
      %v189 = vld [vmem:[%s166 + $0x38] sm:$0xf]
      %v190 = vld [vmem:[%s166 + $0x3c] sm:$0xf]
      %v191 = vld [vmem:[%s1] sm:$0xf]
      %v192 = vld [vmem:[%s1 + $0x4] sm:$0xf]
      %v193 = vld [vmem:[%s1 + $0x8] sm:$0xf]
      %v194 = vld [vmem:[%s1 + $0xc] sm:$0xf]
      %v195 = vld [vmem:[%s1 + $0x10] sm:$0x3]
      %v196 = vld [vmem:[%s2] sm:$0x1]
      %v198 = vlaneseq
      %v199 = vshrl.u32 %v198, 7
      %v200 = vsub.s32 0, %v199
      %v201 = vrot.slane %v196, %v200
      %v219 = vunpack.c.l.b16 %v175
      %v220 = vunpack.c.l.b16 %v176
      %v221 = vunpack.c.l.b16 %v177
      %v222 = vunpack.c.l.b16 %v178
      %v223 = vunpack.c.l.b16 %v179
      %v224 = vunpack.c.l.b16 %v180
      %v225 = vunpack.c.l.b16 %v181
      %v226 = vunpack.c.l.b16 %v182
      %v227 = vunpack.c.l.b16 %v183
      %v228 = vunpack.c.l.b16 %v184
      %v229 = vunpack.c.l.b16 %v185
      %v230 = vunpack.c.l.b16 %v186
      %v231 = vunpack.c.l.b16 %v187
      %v232 = vunpack.c.l.b16 %v188
      %v233 = vunpack.c.l.b16 %v189
      %v234 = vunpack.c.l.b16 %v190
      %v235 = vpack.c.b16 %v220, %v219
      %v236 = vpack.c.b16 %v222, %v221
      %v237 = vpack.c.b16 %v224, %v223
      %v238 = vpack.c.b16 %v226, %v225
      %v239 = vpack.c.b16 %v228, %v227
      %v240 = vpack.c.b16 %v230, %v229
      %v241 = vpack.c.b16 %v232, %v231
      %v242 = vpack.c.b16 %v234, %v233
      %v248 = vunpack.c.l.b16 %v191
      %v249 = vunpack.c.l.b16 %v192
      %v250 = vunpack.c.l.b16 %v193
      %v251 = vunpack.c.l.b16 %v194
      %v252 = vunpack.c.l.b16 %v195
      %v253 = vpack.c.b16 %v249, %v248
      %v254 = vpack.c.b16 %v251, %v250
      %v255 = vpack.c.b16 %v252, %v252
      %vm258 = vcmask 293888
      %v260 = vsel %vm258, %v235, 0
      %v263 = vsel %vm258, %v236, 0
      %v266 = vsel %vm258, %v237, 0
      %v269 = vsel %vm258, %v238, 0
      %v272 = vsel %vm258, %v239, 0
      %v275 = vsel %vm258, %v240, 0
      %v278 = vsel %vm258, %v241, 0
      %v281 = vsel %vm258, %v242, 0
      %vm283 = vcmask 1041408
      %v285 = vsel %vm283, %v255, 0
      %287 = vmatprep.subr.bf16.mxu0 0
      %288 = vmatpush1.bf16.msra.mxu0 %v253
      %289 = vmatprep.subr.bf16.mxu0 0
      %290 = vmatpush1.bf16.msra.mxu0 %v254
      %291 = vmatprep.subr.bf16.mxu0 0
      %292 = vmatpush1.bf16.msra.mxu0 %v285
      %293 = vmatprep.subr.bf16.mxu0 0
      %294 = vmatpush1.bf16.msra.mxu0 0
      %295 = vmatprep.subr.bf16.mxu0 0
      %296 = vmatpush1.bf16.msra.mxu0 0
      %297 = vmatprep.subr.bf16.mxu0 0
      %298 = vmatpush1.bf16.msra.mxu0 0
      %299 = vmatprep.subr.bf16.mxu0 0
      %300 = vmatpush1.bf16.msra.mxu0 0
      %301 = vmatprep.subr.bf16.mxu0 0
      %302 = vmatpush1.bf16.msra.mxu0 0
      %303 = vmatprep.subr.bf16.mxu0 0
      %304 = vmatpush1.bf16.msra.mxu0 0
      %305 = vmatprep.subr.bf16.mxu0 0
      %306 = vmatpush1.bf16.msra.mxu0 0
      %307 = vmatprep.subr.bf16.mxu0 0
      %308 = vmatpush1.bf16.msra.mxu0 0
      %309 = vmatprep.subr.bf16.mxu0 0
      %310 = vmatpush1.bf16.msra.mxu0 0
      %311 = vmatprep.subr.bf16.mxu0 0
      %312 = vmatpush1.bf16.msra.mxu0 0
      %313 = vmatprep.subr.bf16.mxu0 0
      %314 = vmatpush1.bf16.msra.mxu0 0
      %315 = vmatprep.subr.bf16.mxu0 0
      %316 = vmatpush1.bf16.msra.mxu0 0
      %317 = vmatprep.subr.bf16.mxu0 0
      %318 = vmatpush1.bf16.msra.mxu0 0
      %319 = vmatprep.mubr.bf16.mxu0 0
      %320 = vmatmul.mubr.bf16.gmra.mrb[0].mxu0 %v260
      %v321 = vpop.f32.mrb[0].mxu0
      %v322 = vadd.f32 %v201, %v321
      %v323 = vpop.f32.mrb[0].mxu0
      %v324 = vpop.f32.mrb[0].mxu0
      %v325 = vadd.f32 %v201, %v324
      %v326 = vpop.f32.mrb[0].mxu0
      %327 = vmatprep.mubr.bf16.mxu0 0
      %328 = vmatmul.mubr.bf16.gmra.mrb[0].mxu0 %v263
      %v329 = vpop.f32.mrb[0].mxu0
      %v330 = vadd.f32 %v201, %v329
      %v331 = vpop.f32.mrb[0].mxu0
      %v332 = vpop.f32.mrb[0].mxu0
      %v333 = vadd.f32 %v201, %v332
      %v334 = vpop.f32.mrb[0].mxu0
      %335 = vmatprep.mubr.bf16.mxu0 0
      %336 = vmatmul.mubr.bf16.gmra.mrb[0].mxu0 %v266
      %v337 = vpop.f32.mrb[0].mxu0
      %v338 = vadd.f32 %v201, %v337
      %v339 = vpop.f32.mrb[0].mxu0
      %v340 = vpop.f32.mrb[0].mxu0
      %v341 = vadd.f32 %v201, %v340
      %v342 = vpop.f32.mrb[0].mxu0
      %343 = vmatprep.mubr.bf16.mxu0 0
      %344 = vmatmul.mubr.bf16.gmra.mrb[0].mxu0 %v269
      %v345 = vpop.f32.mrb[0].mxu0
      %v346 = vadd.f32 %v201, %v345
      %v347 = vpop.f32.mrb[0].mxu0
      %v348 = vpop.f32.mrb[0].mxu0
      %v349 = vadd.f32 %v201, %v348
      %v350 = vpop.f32.mrb[0].mxu0
      %351 = vmatprep.mubr.bf16.mxu0 0
      %352 = vmatmul.mubr.bf16.gmra.mrb[0].mxu0 %v272
      %v353 = vpop.f32.mrb[0].mxu0
      %v354 = vadd.f32 %v201, %v353
      %v355 = vpop.f32.mrb[0].mxu0
      %v356 = vpop.f32.mrb[0].mxu0
      %v357 = vadd.f32 %v201, %v356
      %v358 = vpop.f32.mrb[0].mxu0
      %359 = vmatprep.mubr.bf16.mxu0 0
      %360 = vmatmul.mubr.bf16.gmra.mrb[0].mxu0 %v275
      %v361 = vpop.f32.mrb[0].mxu0
      %v362 = vadd.f32 %v201, %v361
      %v363 = vpop.f32.mrb[0].mxu0
      %v364 = vpop.f32.mrb[0].mxu0
      %v365 = vadd.f32 %v201, %v364
      %v366 = vpop.f32.mrb[0].mxu0
      %367 = vmatprep.mubr.bf16.mxu0 0
      %368 = vmatmul.mubr.bf16.gmra.mrb[0].mxu0 %v278
      %v369 = vpop.f32.mrb[0].mxu0
      %v370 = vadd.f32 %v201, %v369
      %v371 = vpop.f32.mrb[0].mxu0
      %v372 = vpop.f32.mrb[0].mxu0
      %v373 = vadd.f32 %v201, %v372
      %v374 = vpop.f32.mrb[0].mxu0
      %375 = vmatprep.mubr.bf16.mxu0 0
      %376 = vmatmul.mubr.bf16.gmra.mrb[0].mxu0 %v281
      %v377 = vpop.f32.mrb[0].mxu0
      %v378 = vadd.f32 %v201, %v377
      %v379 = vpop.f32.mrb[0].mxu0
      %v380 = vpop.f32.mrb[0].mxu0
      %v381 = vadd.f32 %v201, %v380
      %v382 = vpop.f32.mrb[0].mxu0
      %383 = vdwg.mxu0
      %vm384 = vcmask 220160
      %385 = vst.msk [vmem:[%s172] sm:$0xff] %vm384, %v322
      %386 = vst.msk [vmem:[%s172 + $0x8] sm:$0xff] %vm384, %v325
      %387 = vst.msk [vmem:[%s172 + $0x10] sm:$0xff] %vm384, %v330
      %388 = vst.msk [vmem:[%s172 + $0x18] sm:$0xff] %vm384, %v333
      %389 = vst.msk [vmem:[%s172 + $0x20] sm:$0xff] %vm384, %v338
      %390 = vst.msk [vmem:[%s172 + $0x28] sm:$0xff] %vm384, %v341
      %391 = vst.msk [vmem:[%s172 + $0x30] sm:$0xff] %vm384, %v346
      %392 = vst.msk [vmem:[%s172 + $0x38] sm:$0xff] %vm384, %v349
      %393 = vst.msk [vmem:[%s172 + $0x40] sm:$0xff] %vm384, %v354
      %394 = vst.msk [vmem:[%s172 + $0x48] sm:$0xff] %vm384, %v357
      %395 = vst.msk [vmem:[%s172 + $0x50] sm:$0xff] %vm384, %v362
      %396 = vst.msk [vmem:[%s172 + $0x58] sm:$0xff] %vm384, %v365
      %397 = vst.msk [vmem:[%s172 + $0x60] sm:$0xff] %vm384, %v370
      %398 = vst.msk [vmem:[%s172 + $0x68] sm:$0xff] %vm384, %v373
      %399 = vst.msk [vmem:[%s172 + $0x70] sm:$0xff] %vm384, %v378
      %400 = vst.msk [vmem:[%s172 + $0x78] sm:$0xff] %vm384, %v381
      %s401 = smul.u32 16, %s14
      %p402 = scmp.lt.s32.totalorder %s401, 63
      %s403 = scalar_select %p402, %s401, 63
      %s404 = smul.addr %s403, 8
      %s405 = scalar_lea.vmem %s3, %s404
      // Predicated region
      $region33: #{dcnv2_forward.7} parent=31 // pred_check
        %p406 = pneg %p100
      $region34: #{dcnv2_forward.7} parent=31 // pred_check_branch
        %408 = sbr.rel (%p406) target = $region36
      $region35: #{dcnv2_forward.7} parent=31 // pred_region
        %s409 = smul.u32 16, %s14
      $region36: #{dcnv2_forward.7} parent=31 // pred_fallthru
        _
    $region32: #{dcnv2_forward.7} parent=5 // pred_fallthru
      _
    %p410 = scmp.le.s32.totalorder 2, %s9
    // Predicated region
    $region37: #{dcnv2_forward.7} parent=5 // pred_check
      %p411 = pneg %p410
    $region38: #{dcnv2_forward.7} parent=5 // pred_check_branch
      %413 = sbr.rel (%p411) target = $region40
    $region39: #{dcnv2_forward.7} parent=5 // pred_region
      %s414 = ssub.s32 %s9, 2
      // Predicated region
      $region41: #{dcnv2_forward.7} parent=39 // pred_check
        %p415 = pneg %p106
      $region42: #{dcnv2_forward.7} parent=39 // pred_check_branch
        %417 = sbr.rel (%p415) target = $region44
      $region43: #{dcnv2_forward.7} parent=39 // pred_region
        %s418 = smul.u32 16, %s15
        %p419 = scmp.lt.s32.totalorder %s418, 63
        %s420 = scalar_select %p419, %s418, 63
        %s421 = smul.addr %s420, 8
        %s422 = scalar_lea.vmem %s3, %s421
      $region44: #{dcnv2_forward.7} parent=39 // pred_fallthru
        _
    $region40: #{dcnv2_forward.7} parent=5 // pred_fallthru
      _
  $region6: #{dcnv2_forward.7} parent=0 // loop_footer
    %s13 = sadd.s32 1, %s9
  $region7: #{dcnv2_forward.7} parent=0 // loop_footer_branch
    %8 = sbr.rel target = $region3
  $region8: #{dcnv2_forward.7} parent=0 // loop_exit
    _

// kernel: dcnv2_forward.11
$region0: #{dcnv2_forward.11}
  #allocation0 [shape = 'u32[]', space=smem, size = 0x4, offset = 0x4, fixed_abs, tag = 'smem constant byte address 0x4 - core index']
  #allocation1 [shape = 'u32[144,128]{1,0:T(1,128)}', space=vmem, size = 0x12000, scoped, tag = 'internal scratch']
  %s0 = inlined_call_operand.vmem [shape: bf16[512,12], index: 0, kind: input, shape index: {}]
  %s1 = inlined_call_operand.vmem [shape: bf16[12,8], index: 1, kind: input, shape index: {}]
  %s2 = inlined_call_operand.vmem [shape: f32[1,8], index: 2, kind: input, shape index: {}]
  %s3 = inlined_call_operand.vmem [shape: f32[512,8], index: 3, kind: output, shape index: {}]
  %s4 = sld [smem:[#allocation0]]
  $region45: #{dcnv2_forward.11} parent=0
    _
  %s6 = ssub.s32 1, %s4
  %s7 = scalar_select 0, %s6, %s4
  loop: start=0, step=1, limit=6
  $region2: #{dcnv2_forward.11} parent=0 // loop_pre_header
    _
  $region3: #{dcnv2_forward.11} parent=0 // loop_header
    %s9 = sphi 0, %s13
    %p10 = scmp.ge.s32.totalorder %s9, 6
    %s19 = sphi 0, %s21
    %s22 = sphi 0, %s19
    %s23 = sphi 0, %s22
    %s39 = sphi 0, %s23
    %s43 = sphi 0, %s43
    %s45 = sphi 0, %s43
    %s46 = sphi 0, %s45
    %s60 = sphi 0, %s46
    %s64 = sphi 0, %s64
    %s66 = sphi 0, %s64
    %s67 = sphi 0, %s66
    %s81 = sphi 0, %s67
    %s87 = sphi 0, %s89
    %s90 = sphi 0, %s87
    %s91 = sphi 0, %s90
    %s107 = sphi 0, %s91
  $region4: #{dcnv2_forward.11} parent=0 // loop_header_branch
    %12 = sbr.rel (%p10) target = $region8
  $region5: #{dcnv2_forward.11} parent=0 // loop_body
    %s14 = ssub.s32 %s9, 1
    %s15 = ssub.s32 %s9, 2
    %s16 = sadd.s32 %s9, 1
    %s17 = ssub.s32 %s9, %s16
    %p18 = scmp.eq.s32.totalorder %s17, 0
    %s20 = sadd.s32 %s19, 1
    %s21 = scalar_select %p18, %s19, %s20
    %p24 = pneg %p18
    %p25 = scmp.eq.s32.totalorder %s9, 3
    %p26 = por %p24, %p25
    %p27 = scmp.ne.s32.totalorder %s19, %s22
    %p28 = scmp.eq.s32.totalorder %s9, 0
    %p29 = por %p27, %p28
    %p30 = scmp.ne.s32.totalorder %s19, %s22
    %p31 = scmp.eq.s32.totalorder %s14, 3
    %p32 = por %p30, %p31
    %p33 = scmp.ne.s32.totalorder %s22, %s23
    %p34 = scmp.eq.s32.totalorder %s14, 0
    %p35 = por %p33, %p34
    %p36 = scmp.ne.s32.totalorder %s22, %s23
    %p37 = scmp.eq.s32.totalorder %s15, 3
    %p38 = por %p36, %p37
    %p40 = scmp.ne.s32.totalorder %s23, %s39
    %p41 = scmp.eq.s32.totalorder %s15, 0
    %p42 = por %p40, %p41
    %s44 = sadd.s32 %s43, 1
    %p47 = scmp.eq.s32.totalorder %s9, 3
    %p48 = scmp.ne.s32.totalorder %s43, %s45
    %p49 = scmp.eq.s32.totalorder %s9, 0
    %p50 = por %p48, %p49
    %p51 = scmp.ne.s32.totalorder %s43, %s45
    %p52 = scmp.eq.s32.totalorder %s14, 3
    %p53 = por %p51, %p52
    %p54 = scmp.ne.s32.totalorder %s45, %s46
    %p55 = scmp.eq.s32.totalorder %s14, 0
    %p56 = por %p54, %p55
    %p57 = scmp.ne.s32.totalorder %s45, %s46
    %p58 = scmp.eq.s32.totalorder %s15, 3
    %p59 = por %p57, %p58
    %p61 = scmp.ne.s32.totalorder %s46, %s60
    %p62 = scmp.eq.s32.totalorder %s15, 0
    %p63 = por %p61, %p62
    %s65 = sadd.s32 %s64, 1
    %p68 = scmp.eq.s32.totalorder %s9, 3
    %p69 = scmp.ne.s32.totalorder %s64, %s66
    %p70 = scmp.eq.s32.totalorder %s9, 0
    %p71 = por %p69, %p70
    %p72 = scmp.ne.s32.totalorder %s64, %s66
    %p73 = scmp.eq.s32.totalorder %s14, 3
    %p74 = por %p72, %p73
    %p75 = scmp.ne.s32.totalorder %s66, %s67
    %p76 = scmp.eq.s32.totalorder %s14, 0
    %p77 = por %p75, %p76
    %p78 = scmp.ne.s32.totalorder %s66, %s67
    %p79 = scmp.eq.s32.totalorder %s15, 3
    %p80 = por %p78, %p79
    %p82 = scmp.ne.s32.totalorder %s67, %s81
    %p83 = scmp.eq.s32.totalorder %s15, 0
    %p84 = por %p82, %p83
    %s85 = ssub.s32 %s9, %s16
    %p86 = scmp.eq.s32.totalorder %s85, 0
    %s88 = sadd.s32 %s87, 1
    %s89 = scalar_select %p86, %s87, %s88
    %p92 = pneg %p86
    %p93 = scmp.eq.s32.totalorder %s9, 3
    %p94 = por %p92, %p93
    %p95 = scmp.ne.s32.totalorder %s87, %s90
    %p96 = scmp.eq.s32.totalorder %s9, 0
    %p97 = por %p95, %p96
    %p98 = scmp.ne.s32.totalorder %s87, %s90
    %p99 = scmp.eq.s32.totalorder %s14, 3
    %p100 = por %p98, %p99
    %p101 = scmp.ne.s32.totalorder %s90, %s91
    %p102 = scmp.eq.s32.totalorder %s14, 0
    %p103 = por %p101, %p102
    %p104 = scmp.ne.s32.totalorder %s90, %s91
    %p105 = scmp.eq.s32.totalorder %s15, 3
    %p106 = por %p104, %p105
    %p108 = scmp.ne.s32.totalorder %s91, %s107
    %p109 = scmp.eq.s32.totalorder %s15, 0
    %p110 = por %p108, %p109
    %p111 = scmp.le.s32.totalorder 1, %s9
    %p112 = scmp.lt.s32.totalorder %s9, 5
    %p113 = pnand %p111, %p112
    %p114 = pneg %p113
    // Predicated region
    $region9: #{dcnv2_forward.11} parent=5 // pred_check
      _
    $region10: #{dcnv2_forward.11} parent=5 // pred_check_branch
      %116 = sbr.rel (%p113) target = $region12
    $region11: #{dcnv2_forward.11} parent=5 // pred_region
      %s117 = ssub.s32 %s9, 1
      // Predicated region
      $region13: #{dcnv2_forward.11} parent=11 // pred_check
        %p118 = pneg %p56
      $region14: #{dcnv2_forward.11} parent=11 // pred_check_branch
        %120 = sbr.rel (%p118) target = $region16
      $region15: #{dcnv2_forward.11} parent=11 // pred_region
        _
      $region16: #{dcnv2_forward.11} parent=11 // pred_fallthru
        _
      // Predicated region
      $region17: #{dcnv2_forward.11} parent=11 // pred_check
        %p121 = pneg %p77
      $region18: #{dcnv2_forward.11} parent=11 // pred_check_branch
        %123 = sbr.rel (%p121) target = $region20
      $region19: #{dcnv2_forward.11} parent=11 // pred_region
        _
      $region20: #{dcnv2_forward.11} parent=11 // pred_fallthru
        _
    $region12: #{dcnv2_forward.11} parent=5 // pred_fallthru
      _
    %p124 = scmp.lt.s32.totalorder %s9, 4
    // Predicated region
    $region21: #{dcnv2_forward.11} parent=5 // pred_check
      %p125 = pneg %p124
    $region22: #{dcnv2_forward.11} parent=5 // pred_check_branch
      %127 = sbr.rel (%p125) target = $region24
    $region23: #{dcnv2_forward.11} parent=5 // pred_region
      // Predicated region
      $region25: #{dcnv2_forward.11} parent=23 // pred_check
        %p128 = pneg %p29
      $region26: #{dcnv2_forward.11} parent=23 // pred_check_branch
        %130 = sbr.rel (%p128) target = $region28
      $region27: #{dcnv2_forward.11} parent=23 // pred_region
        %s131 = smul.u32 16, %s9
        %p132 = scmp.lt.s32.totalorder %s131, 63
        %s133 = scalar_select %p132, %s131, 63
        %s134 = smul.addr %s133, 4
        %s135 = scalar_lea.vmem %s0, %s134
        %s136 = smul.u32 16, %s9
      $region28: #{dcnv2_forward.11} parent=23 // pred_fallthru
        _
    $region24: #{dcnv2_forward.11} parent=5 // pred_fallthru
      _
    %p137 = scmp.le.s32.totalorder 1, %s9
    %p138 = scmp.lt.s32.totalorder %s9, 5
    %p139 = pnand %p137, %p138
    %p140 = pneg %p139
    // Predicated region
    $region29: #{dcnv2_forward.11} parent=5 // pred_check
      _
    $region30: #{dcnv2_forward.11} parent=5 // pred_check_branch
      %142 = sbr.rel (%p139) target = $region32
    $region31: #{dcnv2_forward.11} parent=5 // pred_region
      %s143 = ssub.s32 %s9, 1
      %s144 = smul.u32 16, %s14
      %p145 = scmp.lt.s32.totalorder %s144, 63
      %s146 = scalar_select %p145, %s144, 63
      %s147 = smul.addr %s146, 4
      %s148 = scalar_lea.vmem %s0, %s147
      %p149 = pneg %p35
      %p150 = pneg %p32
      %p151 = pneg %p56
      %p152 = pneg %p53
      %p153 = pneg %p77
      %p154 = pneg %p74
      %p155 = pneg %p103
      %p156 = pneg %p100
      %s157 = smul.u32 16, %s14
      %p158 = scmp.lt.s32.totalorder %s157, 63
      %s159 = scalar_select %p158, %s157, 63
      %s160 = smul.addr %s159, 8
      %s161 = scalar_lea.vmem %s3, %s160
      %s162 = smul.u32 16, %s14
      %p163 = scmp.lt.s32.totalorder %s162, 63
      %s164 = scalar_select %p163, %s162, 63
      %s165 = smul.addr %s164, 4
      %s166 = scalar_lea.vmem %s0, %s165
      %s167 = smul.u32 16, %s14
      %s168 = smul.u32 16, %s14
      %p169 = scmp.lt.s32.totalorder %s168, 63
      %s170 = scalar_select %p169, %s168, 63
      %s171 = smul.addr %s170, 8
      %s172 = scalar_lea.vmem %s3, %s171
      %s173 = smul.u32 16, %s14
      %v175 = vld [vmem:[%s166] sm:$0xf]
      %v176 = vld [vmem:[%s166 + $0x4] sm:$0xf]
      %v177 = vld [vmem:[%s166 + $0x8] sm:$0xf]
      %v178 = vld [vmem:[%s166 + $0xc] sm:$0xf]
      %v179 = vld [vmem:[%s166 + $0x10] sm:$0xf]
      %v180 = vld [vmem:[%s166 + $0x14] sm:$0xf]
      %v181 = vld [vmem:[%s166 + $0x18] sm:$0xf]
      %v182 = vld [vmem:[%s166 + $0x1c] sm:$0xf]
      %v183 = vld [vmem:[%s166 + $0x20] sm:$0xf]
      %v184 = vld [vmem:[%s166 + $0x24] sm:$0xf]
      %v185 = vld [vmem:[%s166 + $0x28] sm:$0xf]
      %v186 = vld [vmem:[%s166 + $0x2c] sm:$0xf]
      %v187 = vld [vmem:[%s166 + $0x30] sm:$0xf]
      %v188 = vld [vmem:[%s166 + $0x34] sm:$0xf]
      %v189 = vld [vmem:[%s166 + $0x38] sm:$0xf]
      %v190 = vld [vmem:[%s166 + $0x3c] sm:$0xf]
      %v191 = vld [vmem:[%s1] sm:$0xf]
      %v192 = vld [vmem:[%s1 + $0x4] sm:$0x3]
      %v193 = vld [vmem:[%s2] sm:$0x1]
      %v195 = vlaneseq
      %v196 = vshrl.u32 %v195, 7
      %v197 = vsub.s32 0, %v196
      %v198 = vrot.slane %v193, %v197
      %v216 = vunpack.c.l.b16 %v175
      %v217 = vunpack.c.l.b16 %v176
      %v218 = vunpack.c.l.b16 %v177
      %v219 = vunpack.c.l.b16 %v178
      %v220 = vunpack.c.l.b16 %v179
      %v221 = vunpack.c.l.b16 %v180
      %v222 = vunpack.c.l.b16 %v181
      %v223 = vunpack.c.l.b16 %v182
      %v224 = vunpack.c.l.b16 %v183
      %v225 = vunpack.c.l.b16 %v184
      %v226 = vunpack.c.l.b16 %v185
      %v227 = vunpack.c.l.b16 %v186
      %v228 = vunpack.c.l.b16 %v187
      %v229 = vunpack.c.l.b16 %v188
      %v230 = vunpack.c.l.b16 %v189
      %v231 = vunpack.c.l.b16 %v190
      %v232 = vpack.c.b16 %v217, %v216
      %v233 = vpack.c.b16 %v219, %v218
      %v234 = vpack.c.b16 %v221, %v220
      %v235 = vpack.c.b16 %v223, %v222
      %v236 = vpack.c.b16 %v225, %v224
      %v237 = vpack.c.b16 %v227, %v226
      %v238 = vpack.c.b16 %v229, %v228
      %v239 = vpack.c.b16 %v231, %v230
      %v242 = vunpack.c.l.b16 %v191
      %v243 = vunpack.c.l.b16 %v192
      %v244 = vpack.c.b16 %v243, %v242
      %vm245 = vcmask 97280
      %v247 = vsel %vm245, %v232, 0
      %v250 = vsel %vm245, %v233, 0
      %v253 = vsel %vm245, %v234, 0
      %v256 = vsel %vm245, %v235, 0
      %v259 = vsel %vm245, %v236, 0
      %v262 = vsel %vm245, %v237, 0
      %v265 = vsel %vm245, %v238, 0
      %v268 = vsel %vm245, %v239, 0
      %vm270 = vcmask 1045504
      %v272 = vsel %vm270, %v244, 0
      %274 = vmatprep.subr.bf16.mxu0 0
      %275 = vmatpush1.bf16.msra.mxu0 %v272
      %276 = vmatprep.subr.bf16.mxu0 0
      %277 = vmatpush1.bf16.msra.mxu0 0
      %278 = vmatprep.subr.bf16.mxu0 0
      %279 = vmatpush1.bf16.msra.mxu0 0
      %280 = vmatprep.subr.bf16.mxu0 0
      %281 = vmatpush1.bf16.msra.mxu0 0
      %282 = vmatprep.subr.bf16.mxu0 0
      %283 = vmatpush1.bf16.msra.mxu0 0
      %284 = vmatprep.subr.bf16.mxu0 0
      %285 = vmatpush1.bf16.msra.mxu0 0
      %286 = vmatprep.subr.bf16.mxu0 0
      %287 = vmatpush1.bf16.msra.mxu0 0
      %288 = vmatprep.subr.bf16.mxu0 0
      %289 = vmatpush1.bf16.msra.mxu0 0
      %290 = vmatprep.subr.bf16.mxu0 0
      %291 = vmatpush1.bf16.msra.mxu0 0
      %292 = vmatprep.subr.bf16.mxu0 0
      %293 = vmatpush1.bf16.msra.mxu0 0
      %294 = vmatprep.subr.bf16.mxu0 0
      %295 = vmatpush1.bf16.msra.mxu0 0
      %296 = vmatprep.subr.bf16.mxu0 0
      %297 = vmatpush1.bf16.msra.mxu0 0
      %298 = vmatprep.subr.bf16.mxu0 0
      %299 = vmatpush1.bf16.msra.mxu0 0
      %300 = vmatprep.subr.bf16.mxu0 0
      %301 = vmatpush1.bf16.msra.mxu0 0
      %302 = vmatprep.subr.bf16.mxu0 0
      %303 = vmatpush1.bf16.msra.mxu0 0
      %304 = vmatprep.subr.bf16.mxu0 0
      %305 = vmatpush1.bf16.msra.mxu0 0
      %306 = vmatprep.mubr.bf16.mxu0 0
      %307 = vmatmul.mubr.bf16.gmra.mrb[0].mxu0 %v247
      %v308 = vpop.f32.mrb[0].mxu0
      %v309 = vadd.f32 %v198, %v308
      %v310 = vpop.f32.mrb[0].mxu0
      %v311 = vpop.f32.mrb[0].mxu0
      %v312 = vadd.f32 %v198, %v311
      %v313 = vpop.f32.mrb[0].mxu0
      %314 = vmatprep.mubr.bf16.mxu0 0
      %315 = vmatmul.mubr.bf16.gmra.mrb[0].mxu0 %v250
      %v316 = vpop.f32.mrb[0].mxu0
      %v317 = vadd.f32 %v198, %v316
      %v318 = vpop.f32.mrb[0].mxu0
      %v319 = vpop.f32.mrb[0].mxu0
      %v320 = vadd.f32 %v198, %v319
      %v321 = vpop.f32.mrb[0].mxu0
      %322 = vmatprep.mubr.bf16.mxu0 0
      %323 = vmatmul.mubr.bf16.gmra.mrb[0].mxu0 %v253
      %v324 = vpop.f32.mrb[0].mxu0
      %v325 = vadd.f32 %v198, %v324
      %v326 = vpop.f32.mrb[0].mxu0
      %v327 = vpop.f32.mrb[0].mxu0
      %v328 = vadd.f32 %v198, %v327
      %v329 = vpop.f32.mrb[0].mxu0
      %330 = vmatprep.mubr.bf16.mxu0 0
      %331 = vmatmul.mubr.bf16.gmra.mrb[0].mxu0 %v256
      %v332 = vpop.f32.mrb[0].mxu0
      %v333 = vadd.f32 %v198, %v332
      %v334 = vpop.f32.mrb[0].mxu0
      %v335 = vpop.f32.mrb[0].mxu0
      %v336 = vadd.f32 %v198, %v335
      %v337 = vpop.f32.mrb[0].mxu0
      %338 = vmatprep.mubr.bf16.mxu0 0
      %339 = vmatmul.mubr.bf16.gmra.mrb[0].mxu0 %v259
      %v340 = vpop.f32.mrb[0].mxu0
      %v341 = vadd.f32 %v198, %v340
      %v342 = vpop.f32.mrb[0].mxu0
      %v343 = vpop.f32.mrb[0].mxu0
      %v344 = vadd.f32 %v198, %v343
      %v345 = vpop.f32.mrb[0].mxu0
      %346 = vmatprep.mubr.bf16.mxu0 0
      %347 = vmatmul.mubr.bf16.gmra.mrb[0].mxu0 %v262
      %v348 = vpop.f32.mrb[0].mxu0
      %v349 = vadd.f32 %v198, %v348
      %v350 = vpop.f32.mrb[0].mxu0
      %v351 = vpop.f32.mrb[0].mxu0
      %v352 = vadd.f32 %v198, %v351
      %v353 = vpop.f32.mrb[0].mxu0
      %354 = vmatprep.mubr.bf16.mxu0 0
      %355 = vmatmul.mubr.bf16.gmra.mrb[0].mxu0 %v265
      %v356 = vpop.f32.mrb[0].mxu0
      %v357 = vadd.f32 %v198, %v356
      %v358 = vpop.f32.mrb[0].mxu0
      %v359 = vpop.f32.mrb[0].mxu0
      %v360 = vadd.f32 %v198, %v359
      %v361 = vpop.f32.mrb[0].mxu0
      %362 = vmatprep.mubr.bf16.mxu0 0
      %363 = vmatmul.mubr.bf16.gmra.mrb[0].mxu0 %v268
      %v364 = vpop.f32.mrb[0].mxu0
      %v365 = vadd.f32 %v198, %v364
      %v366 = vpop.f32.mrb[0].mxu0
      %v367 = vpop.f32.mrb[0].mxu0
      %v368 = vadd.f32 %v198, %v367
      %v369 = vpop.f32.mrb[0].mxu0
      %370 = vdwg.mxu0
      %v371 = vxor.u32 %v309, 2147483648
      %v372 = vxor.u32 %v312, 2147483648
      %v373 = vxor.u32 %v317, 2147483648
      %v374 = vxor.u32 %v320, 2147483648
      %v375 = vxor.u32 %v325, 2147483648
      %v376 = vxor.u32 %v328, 2147483648
      %v377 = vxor.u32 %v333, 2147483648
      %v378 = vxor.u32 %v336, 2147483648
      %v379 = vxor.u32 %v341, 2147483648
      %v380 = vxor.u32 %v344, 2147483648
      %v381 = vxor.u32 %v349, 2147483648
      %v382 = vxor.u32 %v352, 2147483648
      %v383 = vxor.u32 %v357, 2147483648
      %v384 = vxor.u32 %v360, 2147483648
      %v385 = vxor.u32 %v365, 2147483648
      %v386 = vxor.u32 %v368, 2147483648
      %v387 = vmul.f32 %v371, 1.442695
      %v388 = vpow.pop %v387
      %v389 = vmul.f32 %v372, 1.442695
      %v390 = vpow.pop %v389
      %v391 = vmul.f32 %v373, 1.442695
      %v392 = vpow.pop %v391
      %v393 = vmul.f32 %v374, 1.442695
      %v394 = vpow.pop %v393
      %v395 = vmul.f32 %v375, 1.442695
      %v396 = vpow.pop %v395
      %v397 = vmul.f32 %v376, 1.442695
      %v398 = vpow.pop %v397
      %v399 = vmul.f32 %v377, 1.442695
      %v400 = vpow.pop %v399
      %v401 = vmul.f32 %v378, 1.442695
      %v402 = vpow.pop %v401
      %v403 = vmul.f32 %v379, 1.442695
      %v404 = vpow.pop %v403
      %v405 = vmul.f32 %v380, 1.442695
      %v406 = vpow.pop %v405
      %v407 = vmul.f32 %v381, 1.442695
      %v408 = vpow.pop %v407
      %v409 = vmul.f32 %v382, 1.442695
      %v410 = vpow.pop %v409
      %v411 = vmul.f32 %v383, 1.442695
      %v412 = vpow.pop %v411
      %v413 = vmul.f32 %v384, 1.442695
      %v414 = vpow.pop %v413
      %v415 = vmul.f32 %v385, 1.442695
      %v416 = vpow.pop %v415
      %v417 = vmul.f32 %v386, 1.442695
      %v418 = vpow.pop %v417
      %v419 = vadd.f32 %v388, 1.0
      %v420 = vadd.f32 %v390, 1.0
      %v421 = vadd.f32 %v392, 1.0
      %v422 = vadd.f32 %v394, 1.0
      %v423 = vadd.f32 %v396, 1.0
      %v424 = vadd.f32 %v398, 1.0
      %v425 = vadd.f32 %v400, 1.0
      %v426 = vadd.f32 %v402, 1.0
      %v427 = vadd.f32 %v404, 1.0
      %v428 = vadd.f32 %v406, 1.0
      %v429 = vadd.f32 %v408, 1.0
      %v430 = vadd.f32 %v410, 1.0
      %v431 = vadd.f32 %v412, 1.0
      %v432 = vadd.f32 %v414, 1.0
      %v433 = vadd.f32 %v416, 1.0
      %v434 = vadd.f32 %v418, 1.0
      %v435 = vrcp.pop %v419
      %v436 = vmul.f32 1.0, %v435
      %v437 = vrcp.pop %v420
      %v438 = vmul.f32 1.0, %v437
      %v439 = vrcp.pop %v421
      %v440 = vmul.f32 1.0, %v439
      %v441 = vrcp.pop %v422
      %v442 = vmul.f32 1.0, %v441
      %v443 = vrcp.pop %v423
      %v444 = vmul.f32 1.0, %v443
      %v445 = vrcp.pop %v424
      %v446 = vmul.f32 1.0, %v445
      %v447 = vrcp.pop %v425
      %v448 = vmul.f32 1.0, %v447
      %v449 = vrcp.pop %v426
      %v450 = vmul.f32 1.0, %v449
      %v451 = vrcp.pop %v427
      %v452 = vmul.f32 1.0, %v451
      %v453 = vrcp.pop %v428
      %v454 = vmul.f32 1.0, %v453
      %v455 = vrcp.pop %v429
      %v456 = vmul.f32 1.0, %v455
      %v457 = vrcp.pop %v430
      %v458 = vmul.f32 1.0, %v457
      %v459 = vrcp.pop %v431
      %v460 = vmul.f32 1.0, %v459
      %v461 = vrcp.pop %v432
      %v462 = vmul.f32 1.0, %v461
      %v463 = vrcp.pop %v433
      %v464 = vmul.f32 1.0, %v463
      %v465 = vrcp.pop %v434
      %v466 = vmul.f32 1.0, %v465
      %v467 = vmul.f32 %v309, %v436
      %v468 = vmul.f32 %v312, %v438
      %v469 = vmul.f32 %v317, %v440
      %v470 = vmul.f32 %v320, %v442
      %v471 = vmul.f32 %v325, %v444
      %v472 = vmul.f32 %v328, %v446
      %v473 = vmul.f32 %v333, %v448
      %v474 = vmul.f32 %v336, %v450
      %v475 = vmul.f32 %v341, %v452
      %v476 = vmul.f32 %v344, %v454
      %v477 = vmul.f32 %v349, %v456
      %v478 = vmul.f32 %v352, %v458
      %v479 = vmul.f32 %v357, %v460
      %v480 = vmul.f32 %v360, %v462
      %v481 = vmul.f32 %v365, %v464
      %v482 = vmul.f32 %v368, %v466
      %vm483 = vcmask 64512
      %484 = vst.msk [vmem:[%s172] sm:$0xff] %vm483, %v467
      %485 = vst.msk [vmem:[%s172 + $0x8] sm:$0xff] %vm483, %v468
      %486 = vst.msk [vmem:[%s172 + $0x10] sm:$0xff] %vm483, %v469
      %487 = vst.msk [vmem:[%s172 + $0x18] sm:$0xff] %vm483, %v470
      %488 = vst.msk [vmem:[%s172 + $0x20] sm:$0xff] %vm483, %v471
      %489 = vst.msk [vmem:[%s172 + $0x28] sm:$0xff] %vm483, %v472
      %490 = vst.msk [vmem:[%s172 + $0x30] sm:$0xff] %vm483, %v473
      %491 = vst.msk [vmem:[%s172 + $0x38] sm:$0xff] %vm483, %v474
      %492 = vst.msk [vmem:[%s172 + $0x40] sm:$0xff] %vm483, %v475
      %493 = vst.msk [vmem:[%s172 + $0x48] sm:$0xff] %vm483, %v476
      %494 = vst.msk [vmem:[%s172 + $0x50] sm:$0xff] %vm483, %v477
      %495 = vst.msk [vmem:[%s172 + $0x58] sm:$0xff] %vm483, %v478
      %496 = vst.msk [vmem:[%s172 + $0x60] sm:$0xff] %vm483, %v479
      %497 = vst.msk [vmem:[%s172 + $0x68] sm:$0xff] %vm483, %v480
      %498 = vst.msk [vmem:[%s172 + $0x70] sm:$0xff] %vm483, %v481
      %499 = vst.msk [vmem:[%s172 + $0x78] sm:$0xff] %vm483, %v482
      %s500 = smul.u32 16, %s14
      %p501 = scmp.lt.s32.totalorder %s500, 63
      %s502 = scalar_select %p501, %s500, 63
      %s503 = smul.addr %s502, 8
      %s504 = scalar_lea.vmem %s3, %s503
      // Predicated region
      $region33: #{dcnv2_forward.11} parent=31 // pred_check
        %p505 = pneg %p100
      $region34: #{dcnv2_forward.11} parent=31 // pred_check_branch
        %507 = sbr.rel (%p505) target = $region36
      $region35: #{dcnv2_forward.11} parent=31 // pred_region
        %s508 = smul.u32 16, %s14
      $region36: #{dcnv2_forward.11} parent=31 // pred_fallthru
        _
    $region32: #{dcnv2_forward.11} parent=5 // pred_fallthru
      _
    %p509 = scmp.le.s32.totalorder 2, %s9
    // Predicated region
    $region37: #{dcnv2_forward.11} parent=5 // pred_check
      %p510 = pneg %p509
    $region38: #{dcnv2_forward.11} parent=5 // pred_check_branch
      %512 = sbr.rel (%p510) target = $region40
    $region39: #{dcnv2_forward.11} parent=5 // pred_region
      %s513 = ssub.s32 %s9, 2
      // Predicated region
      $region41: #{dcnv2_forward.11} parent=39 // pred_check
        %p514 = pneg %p106
      $region42: #{dcnv2_forward.11} parent=39 // pred_check_branch
        %516 = sbr.rel (%p514) target = $region44
      $region43: #{dcnv2_forward.11} parent=39 // pred_region
        %s517 = smul.u32 16, %s15
        %p518 = scmp.lt.s32.totalorder %s517, 63
        %s519 = scalar_select %p518, %s517, 63
        %s520 = smul.addr %s519, 8
        %s521 = scalar_lea.vmem %s3, %s520
      $region44: #{dcnv2_forward.11} parent=39 // pred_fallthru
        _
    $region40: #{dcnv2_forward.11} parent=5 // pred_fallthru
      _
  $region6: #{dcnv2_forward.11} parent=0 // loop_footer
    %s13 = sadd.s32 1, %s9
  $region7: #{dcnv2_forward.11} parent=0 // loop_footer_branch
    %8 = sbr.rel target = $region3
  $region8: #{dcnv2_forward.11} parent=0 // loop_exit
    _

// kernel: dcnv2_forward.8
$region0: #{dcnv2_forward.8}
  #allocation0 [shape = 'u32[]', space=smem, size = 0x4, offset = 0x4, fixed_abs, tag = 'smem constant byte address 0x4 - core index']
  #allocation1 [shape = 'u32[144,128]{1,0:T(1,128)}', space=vmem, size = 0x12000, scoped, tag = 'internal scratch']
  %s0 = inlined_call_operand.vmem [shape: bf16[512,36], index: 0, kind: input, shape index: {}]
  %s1 = inlined_call_operand.vmem [shape: bf16[36,4], index: 1, kind: input, shape index: {}]
  %s2 = inlined_call_operand.vmem [shape: f32[1,4], index: 2, kind: input, shape index: {}]
  %s3 = inlined_call_operand.vmem [shape: bf16[512,4], index: 3, kind: output, shape index: {}]
  %s4 = sld [smem:[#allocation0]]
  $region45: #{dcnv2_forward.8} parent=0
    _
  %s6 = ssub.s32 1, %s4
  %s7 = scalar_select 0, %s6, %s4
  loop: start=0, step=1, limit=6
  $region2: #{dcnv2_forward.8} parent=0 // loop_pre_header
    _
  $region3: #{dcnv2_forward.8} parent=0 // loop_header
    %s9 = sphi 0, %s13
    %p10 = scmp.ge.s32.totalorder %s9, 6
    %s19 = sphi 0, %s21
    %s22 = sphi 0, %s19
    %s23 = sphi 0, %s22
    %s39 = sphi 0, %s23
    %s43 = sphi 0, %s43
    %s45 = sphi 0, %s43
    %s46 = sphi 0, %s45
    %s60 = sphi 0, %s46
    %s64 = sphi 0, %s64
    %s66 = sphi 0, %s64
    %s67 = sphi 0, %s66
    %s81 = sphi 0, %s67
    %s87 = sphi 0, %s89
    %s90 = sphi 0, %s87
    %s91 = sphi 0, %s90
    %s107 = sphi 0, %s91
  $region4: #{dcnv2_forward.8} parent=0 // loop_header_branch
    %12 = sbr.rel (%p10) target = $region8
  $region5: #{dcnv2_forward.8} parent=0 // loop_body
    %s14 = ssub.s32 %s9, 1
    %s15 = ssub.s32 %s9, 2
    %s16 = sadd.s32 %s9, 1
    %s17 = ssub.s32 %s9, %s16
    %p18 = scmp.eq.s32.totalorder %s17, 0
    %s20 = sadd.s32 %s19, 1
    %s21 = scalar_select %p18, %s19, %s20
    %p24 = pneg %p18
    %p25 = scmp.eq.s32.totalorder %s9, 3
    %p26 = por %p24, %p25
    %p27 = scmp.ne.s32.totalorder %s19, %s22
    %p28 = scmp.eq.s32.totalorder %s9, 0
    %p29 = por %p27, %p28
    %p30 = scmp.ne.s32.totalorder %s19, %s22
    %p31 = scmp.eq.s32.totalorder %s14, 3
    %p32 = por %p30, %p31
    %p33 = scmp.ne.s32.totalorder %s22, %s23
    %p34 = scmp.eq.s32.totalorder %s14, 0
    %p35 = por %p33, %p34
    %p36 = scmp.ne.s32.totalorder %s22, %s23
    %p37 = scmp.eq.s32.totalorder %s15, 3
    %p38 = por %p36, %p37
    %p40 = scmp.ne.s32.totalorder %s23, %s39
    %p41 = scmp.eq.s32.totalorder %s15, 0
    %p42 = por %p40, %p41
    %s44 = sadd.s32 %s43, 1
    %p47 = scmp.eq.s32.totalorder %s9, 3
    %p48 = scmp.ne.s32.totalorder %s43, %s45
    %p49 = scmp.eq.s32.totalorder %s9, 0
    %p50 = por %p48, %p49
    %p51 = scmp.ne.s32.totalorder %s43, %s45
    %p52 = scmp.eq.s32.totalorder %s14, 3
    %p53 = por %p51, %p52
    %p54 = scmp.ne.s32.totalorder %s45, %s46
    %p55 = scmp.eq.s32.totalorder %s14, 0
    %p56 = por %p54, %p55
    %p57 = scmp.ne.s32.totalorder %s45, %s46
    %p58 = scmp.eq.s32.totalorder %s15, 3
    %p59 = por %p57, %p58
    %p61 = scmp.ne.s32.totalorder %s46, %s60
    %p62 = scmp.eq.s32.totalorder %s15, 0
    %p63 = por %p61, %p62
    %s65 = sadd.s32 %s64, 1
    %p68 = scmp.eq.s32.totalorder %s9, 3
    %p69 = scmp.ne.s32.totalorder %s64, %s66
    %p70 = scmp.eq.s32.totalorder %s9, 0
    %p71 = por %p69, %p70
    %p72 = scmp.ne.s32.totalorder %s64, %s66
    %p73 = scmp.eq.s32.totalorder %s14, 3
    %p74 = por %p72, %p73
    %p75 = scmp.ne.s32.totalorder %s66, %s67
    %p76 = scmp.eq.s32.totalorder %s14, 0
    %p77 = por %p75, %p76
    %p78 = scmp.ne.s32.totalorder %s66, %s67
    %p79 = scmp.eq.s32.totalorder %s15, 3
    %p80 = por %p78, %p79
    %p82 = scmp.ne.s32.totalorder %s67, %s81
    %p83 = scmp.eq.s32.totalorder %s15, 0
    %p84 = por %p82, %p83
    %s85 = ssub.s32 %s9, %s16
    %p86 = scmp.eq.s32.totalorder %s85, 0
    %s88 = sadd.s32 %s87, 1
    %s89 = scalar_select %p86, %s87, %s88
    %p92 = pneg %p86
    %p93 = scmp.eq.s32.totalorder %s9, 3
    %p94 = por %p92, %p93
    %p95 = scmp.ne.s32.totalorder %s87, %s90
    %p96 = scmp.eq.s32.totalorder %s9, 0
    %p97 = por %p95, %p96
    %p98 = scmp.ne.s32.totalorder %s87, %s90
    %p99 = scmp.eq.s32.totalorder %s14, 3
    %p100 = por %p98, %p99
    %p101 = scmp.ne.s32.totalorder %s90, %s91
    %p102 = scmp.eq.s32.totalorder %s14, 0
    %p103 = por %p101, %p102
    %p104 = scmp.ne.s32.totalorder %s90, %s91
    %p105 = scmp.eq.s32.totalorder %s15, 3
    %p106 = por %p104, %p105
    %p108 = scmp.ne.s32.totalorder %s91, %s107
    %p109 = scmp.eq.s32.totalorder %s15, 0
    %p110 = por %p108, %p109
    %p111 = scmp.le.s32.totalorder 1, %s9
    %p112 = scmp.lt.s32.totalorder %s9, 5
    %p113 = pnand %p111, %p112
    %p114 = pneg %p113
    // Predicated region
    $region9: #{dcnv2_forward.8} parent=5 // pred_check
      _
    $region10: #{dcnv2_forward.8} parent=5 // pred_check_branch
      %116 = sbr.rel (%p113) target = $region12
    $region11: #{dcnv2_forward.8} parent=5 // pred_region
      %s117 = ssub.s32 %s9, 1
      // Predicated region
      $region13: #{dcnv2_forward.8} parent=11 // pred_check
        %p118 = pneg %p56
      $region14: #{dcnv2_forward.8} parent=11 // pred_check_branch
        %120 = sbr.rel (%p118) target = $region16
      $region15: #{dcnv2_forward.8} parent=11 // pred_region
        _
      $region16: #{dcnv2_forward.8} parent=11 // pred_fallthru
        _
      // Predicated region
      $region17: #{dcnv2_forward.8} parent=11 // pred_check
        %p121 = pneg %p77
      $region18: #{dcnv2_forward.8} parent=11 // pred_check_branch
        %123 = sbr.rel (%p121) target = $region20
      $region19: #{dcnv2_forward.8} parent=11 // pred_region
        _
      $region20: #{dcnv2_forward.8} parent=11 // pred_fallthru
        _
    $region12: #{dcnv2_forward.8} parent=5 // pred_fallthru
      _
    %p124 = scmp.lt.s32.totalorder %s9, 4
    // Predicated region
    $region21: #{dcnv2_forward.8} parent=5 // pred_check
      %p125 = pneg %p124
    $region22: #{dcnv2_forward.8} parent=5 // pred_check_branch
      %127 = sbr.rel (%p125) target = $region24
    $region23: #{dcnv2_forward.8} parent=5 // pred_region
      // Predicated region
      $region25: #{dcnv2_forward.8} parent=23 // pred_check
        %p128 = pneg %p29
      $region26: #{dcnv2_forward.8} parent=23 // pred_check_branch
        %130 = sbr.rel (%p128) target = $region28
      $region27: #{dcnv2_forward.8} parent=23 // pred_region
        %s131 = smul.u32 16, %s9
        %p132 = scmp.lt.s32.totalorder %s131, 63
        %s133 = scalar_select %p132, %s131, 63
        %s134 = smul.addr %s133, 4
        %s135 = scalar_lea.vmem %s0, %s134
        %s136 = smul.u32 16, %s9
      $region28: #{dcnv2_forward.8} parent=23 // pred_fallthru
        _
    $region24: #{dcnv2_forward.8} parent=5 // pred_fallthru
      _
    %p137 = scmp.le.s32.totalorder 1, %s9
    %p138 = scmp.lt.s32.totalorder %s9, 5
    %p139 = pnand %p137, %p138
    %p140 = pneg %p139
    // Predicated region
    $region29: #{dcnv2_forward.8} parent=5 // pred_check
      _
    $region30: #{dcnv2_forward.8} parent=5 // pred_check_branch
      %142 = sbr.rel (%p139) target = $region32
    $region31: #{dcnv2_forward.8} parent=5 // pred_region
      %s143 = ssub.s32 %s9, 1
      %s144 = smul.u32 16, %s14
      %p145 = scmp.lt.s32.totalorder %s144, 63
      %s146 = scalar_select %p145, %s144, 63
      %s147 = smul.addr %s146, 4
      %s148 = scalar_lea.vmem %s0, %s147
      %p149 = pneg %p35
      %p150 = pneg %p32
      %p151 = pneg %p56
      %p152 = pneg %p53
      %p153 = pneg %p77
      %p154 = pneg %p74
      %p155 = pneg %p103
      %p156 = pneg %p100
      %s157 = smul.u32 16, %s14
      %p158 = scmp.lt.s32.totalorder %s157, 63
      %s159 = scalar_select %p158, %s157, 63
      %s160 = smul.addr %s159, 4
      %s161 = scalar_lea.vmem %s3, %s160
      %s162 = smul.u32 16, %s14
      %p163 = scmp.lt.s32.totalorder %s162, 63
      %s164 = scalar_select %p163, %s162, 63
      %s165 = smul.addr %s164, 4
      %s166 = scalar_lea.vmem %s0, %s165
      %s167 = smul.u32 16, %s14
      %s168 = smul.u32 16, %s14
      %p169 = scmp.lt.s32.totalorder %s168, 63
      %s170 = scalar_select %p169, %s168, 63
      %s171 = smul.addr %s170, 4
      %s172 = scalar_lea.vmem %s3, %s171
      %s173 = smul.u32 16, %s14
      %v175 = vld [vmem:[%s166] sm:$0xf]
      %v176 = vld [vmem:[%s166 + $0x4] sm:$0xf]
      %v177 = vld [vmem:[%s166 + $0x8] sm:$0xf]
      %v178 = vld [vmem:[%s166 + $0xc] sm:$0xf]
      %v179 = vld [vmem:[%s166 + $0x10] sm:$0xf]
      %v180 = vld [vmem:[%s166 + $0x14] sm:$0xf]
      %v181 = vld [vmem:[%s166 + $0x18] sm:$0xf]
      %v182 = vld [vmem:[%s166 + $0x1c] sm:$0xf]
      %v183 = vld [vmem:[%s166 + $0x20] sm:$0xf]
      %v184 = vld [vmem:[%s166 + $0x24] sm:$0xf]
      %v185 = vld [vmem:[%s166 + $0x28] sm:$0xf]
      %v186 = vld [vmem:[%s166 + $0x2c] sm:$0xf]
      %v187 = vld [vmem:[%s166 + $0x30] sm:$0xf]
      %v188 = vld [vmem:[%s166 + $0x34] sm:$0xf]
      %v189 = vld [vmem:[%s166 + $0x38] sm:$0xf]
      %v190 = vld [vmem:[%s166 + $0x3c] sm:$0xf]
      %v191 = vld [vmem:[%s1] sm:$0xf]
      %v192 = vld [vmem:[%s1 + $0x4] sm:$0xf]
      %v193 = vld [vmem:[%s1 + $0x8] sm:$0xf]
      %v194 = vld [vmem:[%s1 + $0xc] sm:$0xf]
      %v195 = vld [vmem:[%s1 + $0x10] sm:$0x3]
      %v196 = vld [vmem:[%s2] sm:$0x1]
      %v198 = vlaneseq
      %v199 = vshrl.u32 %v198, 7
      %v200 = vsub.s32 0, %v199
      %v201 = vrot.slane %v196, %v200
      %v219 = vunpack.c.l.b16 %v175
      %v220 = vunpack.c.l.b16 %v176
      %v221 = vunpack.c.l.b16 %v177
      %v222 = vunpack.c.l.b16 %v178
      %v223 = vunpack.c.l.b16 %v179
      %v224 = vunpack.c.l.b16 %v180
      %v225 = vunpack.c.l.b16 %v181
      %v226 = vunpack.c.l.b16 %v182
      %v227 = vunpack.c.l.b16 %v183
      %v228 = vunpack.c.l.b16 %v184
      %v229 = vunpack.c.l.b16 %v185
      %v230 = vunpack.c.l.b16 %v186
      %v231 = vunpack.c.l.b16 %v187
      %v232 = vunpack.c.l.b16 %v188
      %v233 = vunpack.c.l.b16 %v189
      %v234 = vunpack.c.l.b16 %v190
      %v235 = vpack.c.b16 %v220, %v219
      %v236 = vpack.c.b16 %v222, %v221
      %v237 = vpack.c.b16 %v224, %v223
      %v238 = vpack.c.b16 %v226, %v225
      %v239 = vpack.c.b16 %v228, %v227
      %v240 = vpack.c.b16 %v230, %v229
      %v241 = vpack.c.b16 %v232, %v231
      %v242 = vpack.c.b16 %v234, %v233
      %v248 = vunpack.c.l.b16 %v191
      %v249 = vunpack.c.l.b16 %v192
      %v250 = vunpack.c.l.b16 %v193
      %v251 = vunpack.c.l.b16 %v194
      %v252 = vunpack.c.l.b16 %v195
      %v253 = vpack.c.b16 %v249, %v248
      %v254 = vpack.c.b16 %v251, %v250
      %v255 = vpack.c.b16 %v252, %v252
      %vm258 = vcmask 293888
      %v260 = vsel %vm258, %v235, 0
      %v263 = vsel %vm258, %v236, 0
      %v266 = vsel %vm258, %v237, 0
      %v269 = vsel %vm258, %v238, 0
      %v272 = vsel %vm258, %v239, 0
      %v275 = vsel %vm258, %v240, 0
      %v278 = vsel %vm258, %v241, 0
      %v281 = vsel %vm258, %v242, 0
      %vm283 = vcmask 1041408
      %v285 = vsel %vm283, %v255, 0
      %287 = vmatprep.subr.bf16.mxu0 0
      %288 = vmatpush1.bf16.msra.mxu0 %v253
      %289 = vmatprep.subr.bf16.mxu0 0
      %290 = vmatpush1.bf16.msra.mxu0 %v254
      %291 = vmatprep.subr.bf16.mxu0 0
      %292 = vmatpush1.bf16.msra.mxu0 %v285
      %293 = vmatprep.subr.bf16.mxu0 0
      %294 = vmatpush1.bf16.msra.mxu0 0
      %295 = vmatprep.subr.bf16.mxu0 0
      %296 = vmatpush1.bf16.msra.mxu0 0
      %297 = vmatprep.subr.bf16.mxu0 0
      %298 = vmatpush1.bf16.msra.mxu0 0
      %299 = vmatprep.subr.bf16.mxu0 0
      %300 = vmatpush1.bf16.msra.mxu0 0
      %301 = vmatprep.subr.bf16.mxu0 0
      %302 = vmatpush1.bf16.msra.mxu0 0
      %303 = vmatprep.subr.bf16.mxu0 0
      %304 = vmatpush1.bf16.msra.mxu0 0
      %305 = vmatprep.subr.bf16.mxu0 0
      %306 = vmatpush1.bf16.msra.mxu0 0
      %307 = vmatprep.subr.bf16.mxu0 0
      %308 = vmatpush1.bf16.msra.mxu0 0
      %309 = vmatprep.subr.bf16.mxu0 0
      %310 = vmatpush1.bf16.msra.mxu0 0
      %311 = vmatprep.subr.bf16.mxu0 0
      %312 = vmatpush1.bf16.msra.mxu0 0
      %313 = vmatprep.subr.bf16.mxu0 0
      %314 = vmatpush1.bf16.msra.mxu0 0
      %315 = vmatprep.subr.bf16.mxu0 0
      %316 = vmatpush1.bf16.msra.mxu0 0
      %317 = vmatprep.subr.bf16.mxu0 0
      %318 = vmatpush1.bf16.msra.mxu0 0
      %319 = vmatprep.mubr.bf16.mxu0 0
      %320 = vmatmul.mubr.bf16.gmra.mrb[0].mxu0 %v260
      %v321 = vpop.f32.mrb[0].mxu0
      %v322 = vadd.f32 %v201, %v321
      %v323 = vpop.f32.mrb[0].mxu0
      %v324 = vpop.f32.mrb[0].mxu0
      %v325 = vadd.f32 %v201, %v324
      %v326 = vpop.f32.mrb[0].mxu0
      %327 = vmatprep.mubr.bf16.mxu0 0
      %328 = vmatmul.mubr.bf16.gmra.mrb[0].mxu0 %v263
      %v329 = vpop.f32.mrb[0].mxu0
      %v330 = vadd.f32 %v201, %v329
      %v331 = vpop.f32.mrb[0].mxu0
      %v332 = vpop.f32.mrb[0].mxu0
      %v333 = vadd.f32 %v201, %v332
      %v334 = vpop.f32.mrb[0].mxu0
      %335 = vmatprep.mubr.bf16.mxu0 0
      %336 = vmatmul.mubr.bf16.gmra.mrb[0].mxu0 %v266
      %v337 = vpop.f32.mrb[0].mxu0
      %v338 = vadd.f32 %v201, %v337
      %v339 = vpop.f32.mrb[0].mxu0
      %v340 = vpop.f32.mrb[0].mxu0
      %v341 = vadd.f32 %v201, %v340
      %v342 = vpop.f32.mrb[0].mxu0
      %343 = vmatprep.mubr.bf16.mxu0 0
      %344 = vmatmul.mubr.bf16.gmra.mrb[0].mxu0 %v269
      %v345 = vpop.f32.mrb[0].mxu0
      %v346 = vadd.f32 %v201, %v345
      %v347 = vpop.f32.mrb[0].mxu0
      %v348 = vpop.f32.mrb[0].mxu0
      %v349 = vadd.f32 %v201, %v348
      %v350 = vpop.f32.mrb[0].mxu0
      %351 = vmatprep.mubr.bf16.mxu0 0
      %352 = vmatmul.mubr.bf16.gmra.mrb[0].mxu0 %v272
      %v353 = vpop.f32.mrb[0].mxu0
      %v354 = vadd.f32 %v201, %v353
      %v355 = vpop.f32.mrb[0].mxu0
      %v356 = vpop.f32.mrb[0].mxu0
      %v357 = vadd.f32 %v201, %v356
      %v358 = vpop.f32.mrb[0].mxu0
      %359 = vmatprep.mubr.bf16.mxu0 0
      %360 = vmatmul.mubr.bf16.gmra.mrb[0].mxu0 %v275
      %v361 = vpop.f32.mrb[0].mxu0
      %v362 = vadd.f32 %v201, %v361
      %v363 = vpop.f32.mrb[0].mxu0
      %v364 = vpop.f32.mrb[0].mxu0
      %v365 = vadd.f32 %v201, %v364
      %v366 = vpop.f32.mrb[0].mxu0
      %367 = vmatprep.mubr.bf16.mxu0 0
      %368 = vmatmul.mubr.bf16.gmra.mrb[0].mxu0 %v278
      %v369 = vpop.f32.mrb[0].mxu0
      %v370 = vadd.f32 %v201, %v369
      %v371 = vpop.f32.mrb[0].mxu0
      %v372 = vpop.f32.mrb[0].mxu0
      %v373 = vadd.f32 %v201, %v372
      %v374 = vpop.f32.mrb[0].mxu0
      %375 = vmatprep.mubr.bf16.mxu0 0
      %376 = vmatmul.mubr.bf16.gmra.mrb[0].mxu0 %v281
      %v377 = vpop.f32.mrb[0].mxu0
      %v378 = vadd.f32 %v201, %v377
      %v379 = vpop.f32.mrb[0].mxu0
      %v380 = vpop.f32.mrb[0].mxu0
      %v381 = vadd.f32 %v201, %v380
      %v382 = vpop.f32.mrb[0].mxu0
      %383 = vdwg.mxu0
      %v384 = vxor.u32 %v322, 2147483648
      %v385 = vxor.u32 %v325, 2147483648
      %v386 = vxor.u32 %v330, 2147483648
      %v387 = vxor.u32 %v333, 2147483648
      %v388 = vxor.u32 %v338, 2147483648
      %v389 = vxor.u32 %v341, 2147483648
      %v390 = vxor.u32 %v346, 2147483648
      %v391 = vxor.u32 %v349, 2147483648
      %v392 = vxor.u32 %v354, 2147483648
      %v393 = vxor.u32 %v357, 2147483648
      %v394 = vxor.u32 %v362, 2147483648
      %v395 = vxor.u32 %v365, 2147483648
      %v396 = vxor.u32 %v370, 2147483648
      %v397 = vxor.u32 %v373, 2147483648
      %v398 = vxor.u32 %v378, 2147483648
      %v399 = vxor.u32 %v381, 2147483648
      %v400 = vmul.f32 %v384, 1.442695
      %v401 = vpow.pop %v400
      %v402 = vmul.f32 %v385, 1.442695
      %v403 = vpow.pop %v402
      %v404 = vmul.f32 %v386, 1.442695
      %v405 = vpow.pop %v404
      %v406 = vmul.f32 %v387, 1.442695
      %v407 = vpow.pop %v406
      %v408 = vmul.f32 %v388, 1.442695
      %v409 = vpow.pop %v408
      %v410 = vmul.f32 %v389, 1.442695
      %v411 = vpow.pop %v410
      %v412 = vmul.f32 %v390, 1.442695
      %v413 = vpow.pop %v412
      %v414 = vmul.f32 %v391, 1.442695
      %v415 = vpow.pop %v414
      %v416 = vmul.f32 %v392, 1.442695
      %v417 = vpow.pop %v416
      %v418 = vmul.f32 %v393, 1.442695
      %v419 = vpow.pop %v418
      %v420 = vmul.f32 %v394, 1.442695
      %v421 = vpow.pop %v420
      %v422 = vmul.f32 %v395, 1.442695
      %v423 = vpow.pop %v422
      %v424 = vmul.f32 %v396, 1.442695
      %v425 = vpow.pop %v424
      %v426 = vmul.f32 %v397, 1.442695
      %v427 = vpow.pop %v426
      %v428 = vmul.f32 %v398, 1.442695
      %v429 = vpow.pop %v428
      %v430 = vmul.f32 %v399, 1.442695
      %v431 = vpow.pop %v430
      %v432 = vadd.f32 %v401, 1.0
      %v433 = vadd.f32 %v403, 1.0
      %v434 = vadd.f32 %v405, 1.0
      %v435 = vadd.f32 %v407, 1.0
      %v436 = vadd.f32 %v409, 1.0
      %v437 = vadd.f32 %v411, 1.0
      %v438 = vadd.f32 %v413, 1.0
      %v439 = vadd.f32 %v415, 1.0
      %v440 = vadd.f32 %v417, 1.0
      %v441 = vadd.f32 %v419, 1.0
      %v442 = vadd.f32 %v421, 1.0
      %v443 = vadd.f32 %v423, 1.0
      %v444 = vadd.f32 %v425, 1.0
      %v445 = vadd.f32 %v427, 1.0
      %v446 = vadd.f32 %v429, 1.0
      %v447 = vadd.f32 %v431, 1.0
      %v448 = vrcp.pop %v432
      %v449 = vmul.f32 1.0, %v448
      %v450 = vrcp.pop %v433
      %v451 = vmul.f32 1.0, %v450
      %v452 = vrcp.pop %v434
      %v453 = vmul.f32 1.0, %v452
      %v454 = vrcp.pop %v435
      %v455 = vmul.f32 1.0, %v454
      %v456 = vrcp.pop %v436
      %v457 = vmul.f32 1.0, %v456
      %v458 = vrcp.pop %v437
      %v459 = vmul.f32 1.0, %v458
      %v460 = vrcp.pop %v438
      %v461 = vmul.f32 1.0, %v460
      %v462 = vrcp.pop %v439
      %v463 = vmul.f32 1.0, %v462
      %v464 = vrcp.pop %v440
      %v465 = vmul.f32 1.0, %v464
      %v466 = vrcp.pop %v441
      %v467 = vmul.f32 1.0, %v466
      %v468 = vrcp.pop %v442
      %v469 = vmul.f32 1.0, %v468
      %v470 = vrcp.pop %v443
      %v471 = vmul.f32 1.0, %v470
      %v472 = vrcp.pop %v444
      %v473 = vmul.f32 1.0, %v472
      %v474 = vrcp.pop %v445
      %v475 = vmul.f32 1.0, %v474
      %v476 = vrcp.pop %v446
      %v477 = vmul.f32 1.0, %v476
      %v478 = vrcp.pop %v447
      %v479 = vmul.f32 1.0, %v478
      %v480 = vmul.f32 %v322, %v449
      %v481 = vmul.f32 %v325, %v451
      %v482 = vmul.f32 %v330, %v453
      %v483 = vmul.f32 %v333, %v455
      %v484 = vmul.f32 %v338, %v457
      %v485 = vmul.f32 %v341, %v459
      %v486 = vmul.f32 %v346, %v461
      %v487 = vmul.f32 %v349, %v463
      %v488 = vmul.f32 %v354, %v465
      %v489 = vmul.f32 %v357, %v467
      %v490 = vmul.f32 %v362, %v469
      %v491 = vmul.f32 %v365, %v471
      %v492 = vmul.f32 %v370, %v473
      %v493 = vmul.f32 %v373, %v475
      %v494 = vmul.f32 %v378, %v477
      %v495 = vmul.f32 %v381, %v479
      %v496 = vpack.c.bf16 %v481, %v480
      %v497 = vpack.c.bf16 %v483, %v482
      %v498 = vpack.c.bf16 %v485, %v484
      %v499 = vpack.c.bf16 %v487, %v486
      %v500 = vpack.c.bf16 %v489, %v488
      %v501 = vpack.c.bf16 %v491, %v490
      %v502 = vpack.c.bf16 %v493, %v492
      %v503 = vpack.c.bf16 %v495, %v494
      %v512 = vunpack.c.l.b16 %v496
      %v513 = vunpack.c.h.b16 %v496
      %v514 = vunpack.c.l.b16 %v497
      %v515 = vunpack.c.h.b16 %v497
      %v516 = vunpack.c.l.b16 %v498
      %v517 = vunpack.c.h.b16 %v498
      %v518 = vunpack.c.l.b16 %v499
      %v519 = vunpack.c.h.b16 %v499
      %v520 = vunpack.c.l.b16 %v500
      %v521 = vunpack.c.h.b16 %v500
      %v522 = vunpack.c.l.b16 %v501
      %v523 = vunpack.c.h.b16 %v501
      %v524 = vunpack.c.l.b16 %v502
      %v525 = vunpack.c.h.b16 %v502
      %v526 = vunpack.c.l.b16 %v503
      %v527 = vunpack.c.h.b16 %v503
      %v528 = vpack.c.b16 %v512, %v512
      %v529 = vpack.c.b16 %v513, %v513
      %v530 = vpack.c.b16 %v514, %v514
      %v531 = vpack.c.b16 %v515, %v515
      %v532 = vpack.c.b16 %v516, %v516
      %v533 = vpack.c.b16 %v517, %v517
      %v534 = vpack.c.b16 %v518, %v518
      %v535 = vpack.c.b16 %v519, %v519
      %v536 = vpack.c.b16 %v520, %v520
      %v537 = vpack.c.b16 %v521, %v521
      %v538 = vpack.c.b16 %v522, %v522
      %v539 = vpack.c.b16 %v523, %v523
      %v540 = vpack.c.b16 %v524, %v524
      %v541 = vpack.c.b16 %v525, %v525
      %v542 = vpack.c.b16 %v526, %v526
      %v543 = vpack.c.b16 %v527, %v527
      %vm560 = vcmask 27648
      %561 = vst.msk [vmem:[%s172] sm:$0xf] %vm560, %v528
      %562 = vst.msk [vmem:[%s172 + $0x4] sm:$0xf] %vm560, %v529
      %563 = vst.msk [vmem:[%s172 + $0x8] sm:$0xf] %vm560, %v530
      %564 = vst.msk [vmem:[%s172 + $0xc] sm:$0xf] %vm560, %v531
      %565 = vst.msk [vmem:[%s172 + $0x10] sm:$0xf] %vm560, %v532
      %566 = vst.msk [vmem:[%s172 + $0x14] sm:$0xf] %vm560, %v533
      %567 = vst.msk [vmem:[%s172 + $0x18] sm:$0xf] %vm560, %v534
      %568 = vst.msk [vmem:[%s172 + $0x1c] sm:$0xf] %vm560, %v535
      %569 = vst.msk [vmem:[%s172 + $0x20] sm:$0xf] %vm560, %v536
      %570 = vst.msk [vmem:[%s172 + $0x24] sm:$0xf] %vm560, %v537
      %571 = vst.msk [vmem:[%s172 + $0x28] sm:$0xf] %vm560, %v538
      %572 = vst.msk [vmem:[%s172 + $0x2c] sm:$0xf] %vm560, %v539
      %573 = vst.msk [vmem:[%s172 + $0x30] sm:$0xf] %vm560, %v540
      %574 = vst.msk [vmem:[%s172 + $0x34] sm:$0xf] %vm560, %v541
      %575 = vst.msk [vmem:[%s172 + $0x38] sm:$0xf] %vm560, %v542
      %576 = vst.msk [vmem:[%s172 + $0x3c] sm:$0xf] %vm560, %v543
      %s577 = smul.u32 16, %s14
      %p578 = scmp.lt.s32.totalorder %s577, 63
      %s579 = scalar_select %p578, %s577, 63
      %s580 = smul.addr %s579, 4
      %s581 = scalar_lea.vmem %s3, %s580
      // Predicated region
      $region33: #{dcnv2_forward.8} parent=31 // pred_check
        %p582 = pneg %p100
      $region34: #{dcnv2_forward.8} parent=31 // pred_check_branch
        %584 = sbr.rel (%p582) target = $region36
      $region35: #{dcnv2_forward.8} parent=31 // pred_region
        %s585 = smul.u32 16, %s14
      $region36: #{dcnv2_forward.8} parent=31 // pred_fallthru
        _
    $region32: #{dcnv2_forward.8} parent=5 // pred_fallthru
      _
    %p586 = scmp.le.s32.totalorder 2, %s9
    // Predicated region
    $region37: #{dcnv2_forward.8} parent=5 // pred_check
      %p587 = pneg %p586
    $region38: #{dcnv2_forward.8} parent=5 // pred_check_branch
      %589 = sbr.rel (%p587) target = $region40
    $region39: #{dcnv2_forward.8} parent=5 // pred_region
      %s590 = ssub.s32 %s9, 2
      // Predicated region
      $region41: #{dcnv2_forward.8} parent=39 // pred_check
        %p591 = pneg %p106
      $region42: #{dcnv2_forward.8} parent=39 // pred_check_branch
        %593 = sbr.rel (%p591) target = $region44
      $region43: #{dcnv2_forward.8} parent=39 // pred_region
        %s594 = smul.u32 16, %s15
        %p595 = scmp.lt.s32.totalorder %s594, 63
        %s596 = scalar_select %p595, %s594, 63
        %s597 = smul.addr %s596, 4
        %s598 = scalar_lea.vmem %s3, %s597
      $region44: #{dcnv2_forward.8} parent=39 // pred_fallthru
        _
    $region40: #{dcnv2_forward.8} parent=5 // pred_fallthru
      _
  $region6: #{dcnv2_forward.8} parent=0 // loop_footer
    %s13 = sadd.s32 1, %s9
  $region7: #{dcnv2_forward.8} parent=0 // loop_footer_branch
    %8 = sbr.rel target = $region3
  $region8: #{dcnv2_forward.8} parent=0 // loop_exit
    _

</llo_original>
